<compile_context>
chip_gen: v5e
topology: v5e:2x2
jax: 0.10.0
libtpu: 0.0.40
codegen_flags: <defaults>
</compile_context>

<pallas_src>
import numpy as np
import jax
import jax.numpy as jnp
from jax.experimental import pallas as pl
from jax.experimental.pallas import tpu as pltpu


def ensemble_kernel(x_ref, h0_ref, c0_ref,
                    wih_ref, whh_ref, b_ref,
                    w1_ref, b1_ref, w2_ref, b2_ref, w3_ref, b3_ref,
                    q_ref, hout_ref, cout_ref,
                    pg_sc):
    Rp, G = pg_sc.shape            # Rp = T * Bp rows, G = 4 * NC * L fused gate width
    Bp, CL = h0_ref.shape          # CL = NC * L fused hidden width
    T = Rp // Bp
    S = 3 * CL                     # sigmoid block width (i | f | o) in gate-major layout

    # ---- hoisted input projection: one MXU pass for all T*Bp rows, parked in VMEM
    # scratch so ~24 vregs of pre_gates are not live across the serial recurrence ----
    pg_sc[...] = (jnp.dot(x_ref[...], wih_ref[...],
                          preferred_element_type=jnp.float32) + b_ref[...])

    h = h0_ref[...]                # (Bp, NC*L) fused across critics
    c = c0_ref[...]
    h_steps = []

    # ---- fused-critic LSTM recurrence, fully unrolled over T ----
    # W_hh (block-diagonal per critic) is read from its ref inside the dot each step
    # rather than hoisted as a long-lived value.
    for t in range(T):
        gates = (pg_sc[t * Bp:(t + 1) * Bp, :]
                 + jnp.dot(h, whh_ref[...], preferred_element_type=jnp.float32))
        sg = jax.nn.sigmoid(gates[:, :S])          # contiguous i | f | o
        g_g = jnp.tanh(gates[:, S:])               # contiguous g
        i_g = sg[:, 0:CL]
        f_g = sg[:, CL:2 * CL]
        o_g = sg[:, 2 * CL:3 * CL]
        c = f_g * c + i_g * g_g
        h = o_g * jnp.tanh(c)
        h_steps.append(h)                          # stays in vregs (1 vreg per step)

    # fused final LSTM state (split per critic in the wrapper)
    hout_ref[...] = h
    cout_ref[...] = c

    # ---- fused MLP head (block-diag W1 / W2) on all T*Bp rows at once ----
    hs = jnp.concatenate(h_steps, axis=0)          # (Rp, NC*L), row = t*Bp + b
    z1 = jnp.maximum(jnp.dot(hs, w1_ref[...],
                             preferred_element_type=jnp.float32) + b1_ref[...], 0.0)
    z2 = jnp.maximum(jnp.dot(z1, w2_ref[...],
                             preferred_element_type=jnp.float32) + b2_ref[...], 0.0)
    # final projection with the ensemble mean folded in: w3 already scaled by 1/NC,
    # bias = mean(b3).  (1, NC*H2) @ (Rp, NC*H2)^T -> lane-dense (1, Rp).
    q = jax.lax.dot_general(w3_ref[...], z2, (((1,), (1,)), ((), ())),
                            preferred_element_type=jnp.float32) + b3_ref[...]
    q_ref[...] = q


def _block_diag(mats):
    """mats: (NC, r, c) -> block-diagonal (NC*r, NC*c) with EXACT zeros off-diagonal."""
    NC, r, c = mats.shape
    out = jnp.zeros((NC * r, NC * c), mats.dtype)
    for i in range(NC):
        out = out.at[i * r:(i + 1) * r, i * c:(i + 1) * c].set(mats[i])
    return out


def ensemble_forward(obs_flat, h0, c0, params, seq_len):
    """obs_flat: (B*T, D); h0, c0: (num_critics, B, L); params: torch-shaped, stacked."""
    BT, D = obs_flat.shape
    T = seq_len
    B = BT // T
    NC, _, L = h0.shape
    H1 = params['w1'].shape[1]
    H2 = params['w2'].shape[1]
    Bp = max(8, -(-B // 8) * 8)     # pad batch rows up to a full sublane tile
    Rp = T * Bp
    CL = NC * L

    # glue: add_time_dimension (fixed T), time-major, pad batch rows to Bp
    x = jnp.transpose(obs_flat.reshape(B, T, D), (1, 0, 2))             # (T, B, D)
    x = jnp.pad(x, ((0, 0), (0, Bp - B), (0, 0))).reshape(Rp, D)        # row = t*Bp + b

    # fused initial state, critic-major columns [h_c0 | h_c1 | h_c2]
    h0f = jnp.pad(jnp.transpose(h0, (1, 0, 2)).reshape(B, CL), ((0, Bp - B), (0, 0)))
    c0f = jnp.pad(jnp.transpose(c0, (1, 0, 2)).reshape(B, CL), ((0, Bp - B), (0, 0)))

    # ---- fuse the 3 critics' weights (gate-major column layout [i|f|o|g]) ----
    # torch stacks gates along the 4L axis in order [i, f, g, o]
    wih_t = jnp.swapaxes(params['wih'], 1, 2)                           # (NC, D, 4L)
    whh_t = jnp.swapaxes(params['whh'], 1, 2)                           # (NC, L, 4L)
    wi_i, wi_f, wi_g, wi_o = jnp.split(wih_t, 4, axis=2)                # (NC, D, L) each
    wh_i, wh_f, wh_g, wh_o = jnp.split(whh_t, 4, axis=2)                # (NC, L, L) each

    cat_cols = lambda m: jnp.concatenate([m[i] for i in range(NC)], axis=1)
    wih_f = jnp.concatenate([cat_cols(wi_i), cat_cols(wi_f),
                             cat_cols(wi_o), cat_cols(wi_g)], axis=1)   # (D, 4*CL)
    whh_f = jnp.concatenate([_block_diag(wh_i), _block_diag(wh_f),
                             _block_diag(wh_o), _block_diag(wh_g)], axis=1)  # (CL, 4*CL)

    b_all = params['bih'] + params['bhh']                               # (NC, 4L)
    b_i, b_f, b_g, b_o = jnp.split(b_all, 4, axis=1)                    # (NC, L) each
    b_lstm = jnp.concatenate([b_i.reshape(-1), b_f.reshape(-1),
                              b_o.reshape(-1), b_g.reshape(-1)])[None, :]  # (1, 4*CL)

    w1_f = _block_diag(jnp.swapaxes(params['w1'], 1, 2))                # (CL, NC*H1)
    b1_f = params['b1'].reshape(1, NC * H1)
    w2_f = _block_diag(jnp.swapaxes(params['w2'], 1, 2))                # (NC*H1, NC*H2)
    b2_f = params['b2'].reshape(1, NC * H2)
    # fold the ensemble mean over critics into the final projection
    w3_f = params['w3'].reshape(1, NC * H2) / NC                        # (1, NC*H2)
    b3_f = jnp.mean(params['b3']).reshape(1, 1)                         # (1, 1)

    inputs = [x, h0f, c0f, wih_f, whh_f, b_lstm,
              w1_f, b1_f, w2_f, b2_f, w3_f, b3_f]
    in_specs = [pl.BlockSpec(a.shape, lambda i: (0, 0)) for a in inputs]
    out_specs = [
        pl.BlockSpec((1, Rp), lambda i: (0, 0)),      # lane-dense fused q (mean over critics)
        pl.BlockSpec((Bp, CL), lambda i: (0, 0)),     # fused h_out
        pl.BlockSpec((Bp, CL), lambda i: (0, 0)),     # fused c_out
    ]
    out_shape = [
        jax.ShapeDtypeStruct((1, Rp), jnp.float32),
        jax.ShapeDtypeStruct((Bp, CL), jnp.float32),
        jax.ShapeDtypeStruct((Bp, CL), jnp.float32),
    ]
    scratch = [
        pltpu.VMEM((Rp, 4 * CL), jnp.float32),        # hoisted pre_gates, row = t*Bp + b
    ]

    q_all, h_out_f, c_out_f = pl.pallas_call(
        ensemble_kernel,
        out_shape=out_shape,
        grid_spec=pltpu.PrefetchScalarGridSpec(
            num_scalar_prefetch=0,
            grid=(1,),                                # single fused pass (was grid=(NC,))
            in_specs=in_specs,
            out_specs=out_specs,
            scratch_shapes=scratch),
        compiler_params=pltpu.CompilerParams(
            dimension_semantics=("arbitrary",)),
    )(*inputs)

    # glue: drop pad rows, restore b*T + t row order, split fused state per critic
    q = q_all[0].reshape(T, Bp)[:, :B].transpose(1, 0).reshape(BT)      # (BT,)
    h_out = h_out_f[:B].reshape(B, NC, L).transpose(1, 0, 2)            # (NC, B, L)
    c_out = c_out_f[:B].reshape(B, NC, L).transpose(1, 0, 2)
    return q, h_out, c_out


def reference_forward(obs_flat, h0, c0, params, seq_len):
    """Pure-JAX port of EnsembleModel.forward (dqn path, num_atoms=1)."""
    BT, D = obs_flat.shape
    T = seq_len
    B = BT // T
    x = obs_flat.reshape(B, T, D)
    qs, houts, couts = [], [], []
    for ci in range(h0.shape[0]):
        wih, whh = params['wih'][ci], params['whh'][ci]
        bih, bhh = params['bih'][ci], params['bhh'][ci]

        def step(carry, x_t):
            h, c = carry
            gates = x_t @ wih.T + bih + h @ whh.T + bhh
            i, f, g, o = jnp.split(gates, 4, axis=-1)
            c = jax.nn.sigmoid(f) * c + jax.nn.sigmoid(i) * jnp.tanh(g)
            h = jax.nn.sigmoid(o) * jnp.tanh(c)
            return (h, c), h

        (hT, cT), hs = jax.lax.scan(step, (h0[ci], c0[ci]), jnp.swapaxes(x, 0, 1))
        out = jnp.swapaxes(hs, 0, 1).reshape(BT, -1)
        z1 = jax.nn.relu(out @ params['w1'][ci].T + params['b1'][ci])
        z2 = jax.nn.relu(z1 @ params['w2'][ci].T + params['b2'][ci])
        q = z2 @ params['w3'][ci].T + params['b3'][ci]            # (BT, 1)
        qs.append(q)
        houts.append(hT)
        couts.append(cT)
    outputs = jnp.stack(qs, axis=-2)       # (BT, NC, num_atoms)
    outputs = outputs.mean(axis=-1)        # mean over atoms (dqn -> num_atoms=1)
    return outputs.mean(axis=1), jnp.stack(houts), jnp.stack(couts)


if __name__ == "__main__":
    # small config: dqn_type='dqn' (num_atoms=1), num_critics=3, lstm_layers=1
    B, T, D = 2, 8, 16              # batch seqs, seq len, flattened obs dim
    L, H1, H2, NC = 32, 64, 64, 3   # lstm_dim, net_arch=[64, 64], num_critics

    key = jax.random.PRNGKey(0)
    ks = iter(jax.random.split(key, 16))

    def uinit(k, shape, scale):
        return jax.random.uniform(k, shape, jnp.float32, minval=-scale, maxval=scale)

    s_l = 1.0 / float(L) ** 0.5
    params = {
        'wih': uinit(next(ks), (NC, 4 * L, D), s_l),
        'whh': uinit(next(ks), (NC, 4 * L, L), s_l),
        'bih': uinit(next(ks), (NC, 4 * L), s_l),
        'bhh': uinit(next(ks), (NC, 4 * L), s_l),
        'w1': uinit(next(ks), (NC, H1, L), 1.0 / float(L) ** 0.5),
        'b1': uinit(next(ks), (NC, H1), 1.0 / float(L) ** 0.5),
        'w2': uinit(next(ks), (NC, H2, H1), 1.0 / float(H1) ** 0.5),
        'b2': uinit(next(ks), (NC, H2), 1.0 / float(H1) ** 0.5),
        'w3': uinit(next(ks), (NC, 1, H2), 1.0 / float(H2) ** 0.5),
        'b3': uinit(next(ks), (NC, 1), 1.0 / float(H2) ** 0.5),
    }

    obs_flat = jax.random.normal(next(ks), (B * T, D), jnp.float32)
    h0 = 0.1 * jax.random.normal(next(ks), (NC, B, L), jnp.float32)
    c0 = 0.1 * jax.random.normal(next(ks), (NC, B, L), jnp.float32)

    q, h_out, c_out = ensemble_forward(obs_flat, h0, c0, params, seq_len=T)
    jax.block_until_ready((q, h_out, c_out))

    q_ref, h_ref, c_ref = reference_forward(obs_flat, h0, c0, params, seq_len=T)
    assert np.allclose(np.asarray(q), np.asarray(q_ref), rtol=1e-4, atol=1e-4), "q mismatch"
    assert np.allclose(np.asarray(h_out), np.asarray(h_ref), rtol=1e-4, atol=1e-4), "h mismatch"
    assert np.allclose(np.asarray(c_out), np.asarray(c_ref), rtol=1e-4, atol=1e-4), "c mismatch"

    print("KERNEL_OK")
</pallas_src>

<mosaic_0001>
module attributes {stable_mosaic.version = 11 : i64} {
  func.func @ensemble_kernel(%arg0: i32, %arg1: memref<64x16xf32, #tpu.memory_space<vmem>>, %arg2: memref<8x96xf32, #tpu.memory_space<vmem>>, %arg3: memref<8x96xf32, #tpu.memory_space<vmem>>, %arg4: memref<16x384xf32, #tpu.memory_space<vmem>>, %arg5: memref<96x384xf32, #tpu.memory_space<vmem>>, %arg6: memref<1x384xf32, #tpu.memory_space<vmem>>, %arg7: memref<96x192xf32, #tpu.memory_space<vmem>>, %arg8: memref<1x192xf32, #tpu.memory_space<vmem>>, %arg9: memref<192x192xf32, #tpu.memory_space<vmem>>, %arg10: memref<1x192xf32, #tpu.memory_space<vmem>>, %arg11: memref<1x192xf32, #tpu.memory_space<vmem>>, %arg12: memref<1x1xf32, #tpu.memory_space<vmem>>, %arg13: memref<1x64xf32, #tpu.memory_space<vmem>>, %arg14: memref<8x96xf32, #tpu.memory_space<vmem>>, %arg15: memref<8x96xf32, #tpu.memory_space<vmem>>, %arg16: memref<64x384xf32, #tpu.memory_space<vmem>>) attributes {dimension_semantics = [#tpu.dimension_semantics<arbitrary>], iteration_bounds = array<i64: 1>, scalar_prefetch = 0 : i64, scratch_operands = 1 : i64, tpu.core_type = #tpu.core_type<tc>, window_params = [{pipeline_mode = #tpu.pipeline_mode<synchronous>, transform_indices = @transform_0, window_bounds = array<i64: 64, 16>}, {pipeline_mode = #tpu.pipeline_mode<synchronous>, transform_indices = @transform_1, window_bounds = array<i64: 8, 96>}, {pipeline_mode = #tpu.pipeline_mode<synchronous>, transform_indices = @transform_2, window_bounds = array<i64: 8, 96>}, {pipeline_mode = #tpu.pipeline_mode<synchronous>, transform_indices = @transform_3, window_bounds = array<i64: 16, 384>}, {pipeline_mode = #tpu.pipeline_mode<synchronous>, transform_indices = @transform_4, window_bounds = array<i64: 96, 384>}, {pipeline_mode = #tpu.pipeline_mode<synchronous>, transform_indices = @transform_5, window_bounds = array<i64: 1, 384>}, {pipeline_mode = #tpu.pipeline_mode<synchronous>, transform_indices = @transform_6, window_bounds = array<i64: 96, 192>}, {pipeline_mode = #tpu.pipeline_mode<synchronous>, transform_indices = @transform_7, window_bounds = array<i64: 1, 192>}, {pipeline_mode = #tpu.pipeline_mode<synchronous>, transform_indices = @transform_8, window_bounds = array<i64: 192, 192>}, {pipeline_mode = #tpu.pipeline_mode<synchronous>, transform_indices = @transform_9, window_bounds = array<i64: 1, 192>}, {pipeline_mode = #tpu.pipeline_mode<synchronous>, transform_indices = @transform_10, window_bounds = array<i64: 1, 192>}, {pipeline_mode = #tpu.pipeline_mode<synchronous>, transform_indices = @transform_11, window_bounds = array<i64: 1, 1>}, {pipeline_mode = #tpu.pipeline_mode<synchronous>, transform_indices = @transform_12, window_bounds = array<i64: 1, 64>}, {pipeline_mode = #tpu.pipeline_mode<synchronous>, transform_indices = @transform_13, window_bounds = array<i64: 8, 96>}, {pipeline_mode = #tpu.pipeline_mode<synchronous>, transform_indices = @transform_14, window_bounds = array<i64: 8, 96>}]} {
    %c0 = arith.constant 0 : index
    %c0_0 = arith.constant 0 : index
    %0 = vector.load %arg1[%c0, %c0_0] : memref<64x16xf32, #tpu.memory_space<vmem>>, vector<64x16xf32>
    %c0_1 = arith.constant 0 : index
    %c0_2 = arith.constant 0 : index
    %1 = vector.load %arg4[%c0_1, %c0_2] : memref<16x384xf32, #tpu.memory_space<vmem>>, vector<16x384xf32>
    %cst = arith.constant dense<0.000000e+00> : vector<64x384xf32>
    %2 = tpu.matmul %0, %1, %cst {dimension_numbers = #tpu.dot_dimension_numbers<[1], [0], [0], [1], [0, 0, 1, 1], [], []>} : vector<64x16xf32>, vector<16x384xf32>, vector<64x384xf32> -> vector<64x384xf32>
    %c0_3 = arith.constant 0 : index
    %c0_4 = arith.constant 0 : index
    %3 = vector.load %arg6[%c0_3, %c0_4] : memref<1x384xf32, #tpu.memory_space<vmem>>, vector<1x384xf32>
    %4 = vector.broadcast %3 : vector<1x384xf32> to vector<64x384xf32>
    %5 = arith.addf %2, %4 : vector<64x384xf32>
    %c0_5 = arith.constant 0 : index
    %c0_6 = arith.constant 0 : index
    %6 = vector.load %arg16[%c0_5, %c0_6] : memref<64x384xf32, #tpu.memory_space<vmem>>, vector<64x384xf32>
    tpu.vector_store %arg16[%c0_5, %c0_6], %5 {strides = array<i32>} : memref<64x384xf32, #tpu.memory_space<vmem>>, vector<64x384xf32>,
    %c0_7 = arith.constant 0 : index
    %c0_8 = arith.constant 0 : index
    %7 = vector.load %arg2[%c0_7, %c0_8] : memref<8x96xf32, #tpu.memory_space<vmem>>, vector<8x96xf32>
    %c0_9 = arith.constant 0 : index
    %c0_10 = arith.constant 0 : index
    %8 = vector.load %arg3[%c0_9, %c0_10] : memref<8x96xf32, #tpu.memory_space<vmem>>, vector<8x96xf32>
    %c0_11 = arith.constant 0 : index
    %c0_12 = arith.constant 0 : index
    %9 = vector.load %arg16[%c0_11, %c0_12] : memref<64x384xf32, #tpu.memory_space<vmem>>, vector<8x384xf32>
    %c0_13 = arith.constant 0 : index
    %c0_14 = arith.constant 0 : index
    %10 = vector.load %arg5[%c0_13, %c0_14] : memref<96x384xf32, #tpu.memory_space<vmem>>, vector<96x384xf32>
    %cst_15 = arith.constant dense<0.000000e+00> : vector<8x384xf32>
    %11 = tpu.matmul %7, %10, %cst_15 {dimension_numbers = #tpu.dot_dimension_numbers<[1], [0], [0], [1], [0, 0, 1, 1], [], []>} : vector<8x96xf32>, vector<96x384xf32>, vector<8x384xf32> -> vector<8x384xf32>
    %12 = arith.addf %9, %11 : vector<8x384xf32>
    %13 = vector.extract_strided_slice %12 {offsets = [0, 0], sizes = [8, 288], strides = [1, 1]} : vector<8x384xf32> to vector<8x288xf32>
    %14 = arith.negf %13 : vector<8x288xf32>
    %15 = math.exp %14 : vector<8x288xf32>
    %cst_16 = arith.constant 1.000000e+00 : f32
    %16 = vector.broadcast %cst_16 : f32 to vector<8x288xf32>
    %17 = arith.addf %16, %15 : vector<8x288xf32>
    %18 = arith.divf %16, %17 : vector<8x288xf32>
    %19 = vector.extract_strided_slice %12 {offsets = [0, 288], sizes = [8, 96], strides = [1, 1]} : vector<8x384xf32> to vector<8x96xf32>
    %20 = math.tanh %19 : vector<8x96xf32>
    %21 = vector.extract_strided_slice %18 {offsets = [0, 0], sizes = [8, 96], strides = [1, 1]} : vector<8x288xf32> to vector<8x96xf32>
    %22 = vector.extract_strided_slice %18 {offsets = [0, 96], sizes = [8, 96], strides = [1, 1]} : vector<8x288xf32> to vector<8x96xf32>
    %23 = vector.extract_strided_slice %18 {offsets = [0, 192], sizes = [8, 96], strides = [1, 1]} : vector<8x288xf32> to vector<8x96xf32>
    %24 = arith.mulf %22, %8 : vector<8x96xf32>
    %25 = arith.mulf %21, %20 : vector<8x96xf32>
    %26 = arith.addf %24, %25 : vector<8x96xf32>
    %27 = math.tanh %26 : vector<8x96xf32>
    %28 = arith.mulf %23, %27 : vector<8x96xf32>
    %c8 = arith.constant 8 : index
    %c0_17 = arith.constant 0 : index
    %29 = vector.load %arg16[%c8, %c0_17] : memref<64x384xf32, #tpu.memory_space<vmem>>, vector<8x384xf32>
    %c0_18 = arith.constant 0 : index
    %c0_19 = arith.constant 0 : index
    %30 = vector.load %arg5[%c0_18, %c0_19] : memref<96x384xf32, #tpu.memory_space<vmem>>, vector<96x384xf32>
    %cst_20 = arith.constant dense<0.000000e+00> : vector<8x384xf32>
    %31 = tpu.matmul %28, %30, %cst_20 {dimension_numbers = #tpu.dot_dimension_numbers<[1], [0], [0], [1], [0, 0, 1, 1], [], []>} : vector<8x96xf32>, vector<96x384xf32>, vector<8x384xf32> -> vector<8x384xf32>
    %32 = arith.addf %29, %31 : vector<8x384xf32>
    %33 = vector.extract_strided_slice %32 {offsets = [0, 0], sizes = [8, 288], strides = [1, 1]} : vector<8x384xf32> to vector<8x288xf32>
    %34 = arith.negf %33 : vector<8x288xf32>
    %35 = math.exp %34 : vector<8x288xf32>
    %cst_21 = arith.constant 1.000000e+00 : f32
    %36 = vector.broadcast %cst_21 : f32 to vector<8x288xf32>
    %37 = arith.addf %36, %35 : vector<8x288xf32>
    %38 = arith.divf %36, %37 : vector<8x288xf32>
    %39 = vector.extract_strided_slice %32 {offsets = [0, 288], sizes = [8, 96], strides = [1, 1]} : vector<8x384xf32> to vector<8x96xf32>
    %40 = math.tanh %39 : vector<8x96xf32>
    %41 = vector.extract_strided_slice %38 {offsets = [0, 0], sizes = [8, 96], strides = [1, 1]} : vector<8x288xf32> to vector<8x96xf32>
    %42 = vector.extract_strided_slice %38 {offsets = [0, 96], sizes = [8, 96], strides = [1, 1]} : vector<8x288xf32> to vector<8x96xf32>
    %43 = vector.extract_strided_slice %38 {offsets = [0, 192], sizes = [8, 96], strides = [1, 1]} : vector<8x288xf32> to vector<8x96xf32>
    %44 = arith.mulf %42, %26 : vector<8x96xf32>
    %45 = arith.mulf %41, %40 : vector<8x96xf32>
    %46 = arith.addf %44, %45 : vector<8x96xf32>
    %47 = math.tanh %46 : vector<8x96xf32>
    %48 = arith.mulf %43, %47 : vector<8x96xf32>
    %c16 = arith.constant 16 : index
    %c0_22 = arith.constant 0 : index
    %49 = vector.load %arg16[%c16, %c0_22] : memref<64x384xf32, #tpu.memory_space<vmem>>, vector<8x384xf32>
    %c0_23 = arith.constant 0 : index
    %c0_24 = arith.constant 0 : index
    %50 = vector.load %arg5[%c0_23, %c0_24] : memref<96x384xf32, #tpu.memory_space<vmem>>, vector<96x384xf32>
    %cst_25 = arith.constant dense<0.000000e+00> : vector<8x384xf32>
    %51 = tpu.matmul %48, %50, %cst_25 {dimension_numbers = #tpu.dot_dimension_numbers<[1], [0], [0], [1], [0, 0, 1, 1], [], []>} : vector<8x96xf32>, vector<96x384xf32>, vector<8x384xf32> -> vector<8x384xf32>
    %52 = arith.addf %49, %51 : vector<8x384xf32>
    %53 = vector.extract_strided_slice %52 {offsets = [0, 0], sizes = [8, 288], strides = [1, 1]} : vector<8x384xf32> to vector<8x288xf32>
    %54 = arith.negf %53 : vector<8x288xf32>
    %55 = math.exp %54 : vector<8x288xf32>
    %cst_26 = arith.constant 1.000000e+00 : f32
    %56 = vector.broadcast %cst_26 : f32 to vector<8x288xf32>
    %57 = arith.addf %56, %55 : vector<8x288xf32>
    %58 = arith.divf %56, %57 : vector<8x288xf32>
    %59 = vector.extract_strided_slice %52 {offsets = [0, 288], sizes = [8, 96], strides = [1, 1]} : vector<8x384xf32> to vector<8x96xf32>
    %60 = math.tanh %59 : vector<8x96xf32>
    %61 = vector.extract_strided_slice %58 {offsets = [0, 0], sizes = [8, 96], strides = [1, 1]} : vector<8x288xf32> to vector<8x96xf32>
    %62 = vector.extract_strided_slice %58 {offsets = [0, 96], sizes = [8, 96], strides = [1, 1]} : vector<8x288xf32> to vector<8x96xf32>
    %63 = vector.extract_strided_slice %58 {offsets = [0, 192], sizes = [8, 96], strides = [1, 1]} : vector<8x288xf32> to vector<8x96xf32>
    %64 = arith.mulf %62, %46 : vector<8x96xf32>
    %65 = arith.mulf %61, %60 : vector<8x96xf32>
    %66 = arith.addf %64, %65 : vector<8x96xf32>
    %67 = math.tanh %66 : vector<8x96xf32>
    %68 = arith.mulf %63, %67 : vector<8x96xf32>
    %c24 = arith.constant 24 : index
    %c0_27 = arith.constant 0 : index
    %69 = vector.load %arg16[%c24, %c0_27] : memref<64x384xf32, #tpu.memory_space<vmem>>, vector<8x384xf32>
    %c0_28 = arith.constant 0 : index
    %c0_29 = arith.constant 0 : index
    %70 = vector.load %arg5[%c0_28, %c0_29] : memref<96x384xf32, #tpu.memory_space<vmem>>, vector<96x384xf32>
    %cst_30 = arith.constant dense<0.000000e+00> : vector<8x384xf32>
    %71 = tpu.matmul %68, %70, %cst_30 {dimension_numbers = #tpu.dot_dimension_numbers<[1], [0], [0], [1], [0, 0, 1, 1], [], []>} : vector<8x96xf32>, vector<96x384xf32>, vector<8x384xf32> -> vector<8x384xf32>
    %72 = arith.addf %69, %71 : vector<8x384xf32>
    %73 = vector.extract_strided_slice %72 {offsets = [0, 0], sizes = [8, 288], strides = [1, 1]} : vector<8x384xf32> to vector<8x288xf32>
    %74 = arith.negf %73 : vector<8x288xf32>
    %75 = math.exp %74 : vector<8x288xf32>
    %cst_31 = arith.constant 1.000000e+00 : f32
    %76 = vector.broadcast %cst_31 : f32 to vector<8x288xf32>
    %77 = arith.addf %76, %75 : vector<8x288xf32>
    %78 = arith.divf %76, %77 : vector<8x288xf32>
    %79 = vector.extract_strided_slice %72 {offsets = [0, 288], sizes = [8, 96], strides = [1, 1]} : vector<8x384xf32> to vector<8x96xf32>
    %80 = math.tanh %79 : vector<8x96xf32>
    %81 = vector.extract_strided_slice %78 {offsets = [0, 0], sizes = [8, 96], strides = [1, 1]} : vector<8x288xf32> to vector<8x96xf32>
    %82 = vector.extract_strided_slice %78 {offsets = [0, 96], sizes = [8, 96], strides = [1, 1]} : vector<8x288xf32> to vector<8x96xf32>
    %83 = vector.extract_strided_slice %78 {offsets = [0, 192], sizes = [8, 96], strides = [1, 1]} : vector<8x288xf32> to vector<8x96xf32>
    %84 = arith.mulf %82, %66 : vector<8x96xf32>
    %85 = arith.mulf %81, %80 : vector<8x96xf32>
    %86 = arith.addf %84, %85 : vector<8x96xf32>
    %87 = math.tanh %86 : vector<8x96xf32>
    %88 = arith.mulf %83, %87 : vector<8x96xf32>
    %c32 = arith.constant 32 : index
    %c0_32 = arith.constant 0 : index
    %89 = vector.load %arg16[%c32, %c0_32] : memref<64x384xf32, #tpu.memory_space<vmem>>, vector<8x384xf32>
    %c0_33 = arith.constant 0 : index
    %c0_34 = arith.constant 0 : index
    %90 = vector.load %arg5[%c0_33, %c0_34] : memref<96x384xf32, #tpu.memory_space<vmem>>, vector<96x384xf32>
    %cst_35 = arith.constant dense<0.000000e+00> : vector<8x384xf32>
    %91 = tpu.matmul %88, %90, %cst_35 {dimension_numbers = #tpu.dot_dimension_numbers<[1], [0], [0], [1], [0, 0, 1, 1], [], []>} : vector<8x96xf32>, vector<96x384xf32>, vector<8x384xf32> -> vector<8x384xf32>
    %92 = arith.addf %89, %91 : vector<8x384xf32>
    %93 = vector.extract_strided_slice %92 {offsets = [0, 0], sizes = [8, 288], strides = [1, 1]} : vector<8x384xf32> to vector<8x288xf32>
    %94 = arith.negf %93 : vector<8x288xf32>
    %95 = math.exp %94 : vector<8x288xf32>
    %cst_36 = arith.constant 1.000000e+00 : f32
    %96 = vector.broadcast %cst_36 : f32 to vector<8x288xf32>
    %97 = arith.addf %96, %95 : vector<8x288xf32>
    %98 = arith.divf %96, %97 : vector<8x288xf32>
    %99 = vector.extract_strided_slice %92 {offsets = [0, 288], sizes = [8, 96], strides = [1, 1]} : vector<8x384xf32> to vector<8x96xf32>
    %100 = math.tanh %99 : vector<8x96xf32>
    %101 = vector.extract_strided_slice %98 {offsets = [0, 0], sizes = [8, 96], strides = [1, 1]} : vector<8x288xf32> to vector<8x96xf32>
    %102 = vector.extract_strided_slice %98 {offsets = [0, 96], sizes = [8, 96], strides = [1, 1]} : vector<8x288xf32> to vector<8x96xf32>
    %103 = vector.extract_strided_slice %98 {offsets = [0, 192], sizes = [8, 96], strides = [1, 1]} : vector<8x288xf32> to vector<8x96xf32>
    %104 = arith.mulf %102, %86 : vector<8x96xf32>
    %105 = arith.mulf %101, %100 : vector<8x96xf32>
    %106 = arith.addf %104, %105 : vector<8x96xf32>
    %107 = math.tanh %106 : vector<8x96xf32>
    %108 = arith.mulf %103, %107 : vector<8x96xf32>
    %c40 = arith.constant 40 : index
    %c0_37 = arith.constant 0 : index
    %109 = vector.load %arg16[%c40, %c0_37] : memref<64x384xf32, #tpu.memory_space<vmem>>, vector<8x384xf32>
    %c0_38 = arith.constant 0 : index
    %c0_39 = arith.constant 0 : index
    %110 = vector.load %arg5[%c0_38, %c0_39] : memref<96x384xf32, #tpu.memory_space<vmem>>, vector<96x384xf32>
    %cst_40 = arith.constant dense<0.000000e+00> : vector<8x384xf32>
    %111 = tpu.matmul %108, %110, %cst_40 {dimension_numbers = #tpu.dot_dimension_numbers<[1], [0], [0], [1], [0, 0, 1, 1], [], []>} : vector<8x96xf32>, vector<96x384xf32>, vector<8x384xf32> -> vector<8x384xf32>
    %112 = arith.addf %109, %111 : vector<8x384xf32>
    %113 = vector.extract_strided_slice %112 {offsets = [0, 0], sizes = [8, 288], strides = [1, 1]} : vector<8x384xf32> to vector<8x288xf32>
    %114 = arith.negf %113 : vector<8x288xf32>
    %115 = math.exp %114 : vector<8x288xf32>
    %cst_41 = arith.constant 1.000000e+00 : f32
    %116 = vector.broadcast %cst_41 : f32 to vector<8x288xf32>
    %117 = arith.addf %116, %115 : vector<8x288xf32>
    %118 = arith.divf %116, %117 : vector<8x288xf32>
    %119 = vector.extract_strided_slice %112 {offsets = [0, 288], sizes = [8, 96], strides = [1, 1]} : vector<8x384xf32> to vector<8x96xf32>
    %120 = math.tanh %119 : vector<8x96xf32>
    %121 = vector.extract_strided_slice %118 {offsets = [0, 0], sizes = [8, 96], strides = [1, 1]} : vector<8x288xf32> to vector<8x96xf32>
    %122 = vector.extract_strided_slice %118 {offsets = [0, 96], sizes = [8, 96], strides = [1, 1]} : vector<8x288xf32> to vector<8x96xf32>
    %123 = vector.extract_strided_slice %118 {offsets = [0, 192], sizes = [8, 96], strides = [1, 1]} : vector<8x288xf32> to vector<8x96xf32>
    %124 = arith.mulf %122, %106 : vector<8x96xf32>
    %125 = arith.mulf %121, %120 : vector<8x96xf32>
    %126 = arith.addf %124, %125 : vector<8x96xf32>
    %127 = math.tanh %126 : vector<8x96xf32>
    %128 = arith.mulf %123, %127 : vector<8x96xf32>
    %c48 = arith.constant 48 : index
    %c0_42 = arith.constant 0 : index
    %129 = vector.load %arg16[%c48, %c0_42] : memref<64x384xf32, #tpu.memory_space<vmem>>, vector<8x384xf32>
    %c0_43 = arith.constant 0 : index
    %c0_44 = arith.constant 0 : index
    %130 = vector.load %arg5[%c0_43, %c0_44] : memref<96x384xf32, #tpu.memory_space<vmem>>, vector<96x384xf32>
    %cst_45 = arith.constant dense<0.000000e+00> : vector<8x384xf32>
    %131 = tpu.matmul %128, %130, %cst_45 {dimension_numbers = #tpu.dot_dimension_numbers<[1], [0], [0], [1], [0, 0, 1, 1], [], []>} : vector<8x96xf32>, vector<96x384xf32>, vector<8x384xf32> -> vector<8x384xf32>
    %132 = arith.addf %129, %131 : vector<8x384xf32>
    %133 = vector.extract_strided_slice %132 {offsets = [0, 0], sizes = [8, 288], strides = [1, 1]} : vector<8x384xf32> to vector<8x288xf32>
    %134 = arith.negf %133 : vector<8x288xf32>
    %135 = math.exp %134 : vector<8x288xf32>
    %cst_46 = arith.constant 1.000000e+00 : f32
    %136 = vector.broadcast %cst_46 : f32 to vector<8x288xf32>
    %137 = arith.addf %136, %135 : vector<8x288xf32>
    %138 = arith.divf %136, %137 : vector<8x288xf32>
    %139 = vector.extract_strided_slice %132 {offsets = [0, 288], sizes = [8, 96], strides = [1, 1]} : vector<8x384xf32> to vector<8x96xf32>
    %140 = math.tanh %139 : vector<8x96xf32>
    %141 = vector.extract_strided_slice %138 {offsets = [0, 0], sizes = [8, 96], strides = [1, 1]} : vector<8x288xf32> to vector<8x96xf32>
    %142 = vector.extract_strided_slice %138 {offsets = [0, 96], sizes = [8, 96], strides = [1, 1]} : vector<8x288xf32> to vector<8x96xf32>
    %143 = vector.extract_strided_slice %138 {offsets = [0, 192], sizes = [8, 96], strides = [1, 1]} : vector<8x288xf32> to vector<8x96xf32>
    %144 = arith.mulf %142, %126 : vector<8x96xf32>
    %145 = arith.mulf %141, %140 : vector<8x96xf32>
    %146 = arith.addf %144, %145 : vector<8x96xf32>
    %147 = math.tanh %146 : vector<8x96xf32>
    %148 = arith.mulf %143, %147 : vector<8x96xf32>
    %c56 = arith.constant 56 : index
    %c0_47 = arith.constant 0 : index
    %149 = vector.load %arg16[%c56, %c0_47] : memref<64x384xf32, #tpu.memory_space<vmem>>, vector<8x384xf32>
    %c0_48 = arith.constant 0 : index
    %c0_49 = arith.constant 0 : index
    %150 = vector.load %arg5[%c0_48, %c0_49] : memref<96x384xf32, #tpu.memory_space<vmem>>, vector<96x384xf32>
    %cst_50 = arith.constant dense<0.000000e+00> : vector<8x384xf32>
    %151 = tpu.matmul %148, %150, %cst_50 {dimension_numbers = #tpu.dot_dimension_numbers<[1], [0], [0], [1], [0, 0, 1, 1], [], []>} : vector<8x96xf32>, vector<96x384xf32>, vector<8x384xf32> -> vector<8x384xf32>
    %152 = arith.addf %149, %151 : vector<8x384xf32>
    %153 = vector.extract_strided_slice %152 {offsets = [0, 0], sizes = [8, 288], strides = [1, 1]} : vector<8x384xf32> to vector<8x288xf32>
    %154 = arith.negf %153 : vector<8x288xf32>
    %155 = math.exp %154 : vector<8x288xf32>
    %cst_51 = arith.constant 1.000000e+00 : f32
    %156 = vector.broadcast %cst_51 : f32 to vector<8x288xf32>
    %157 = arith.addf %156, %155 : vector<8x288xf32>
    %158 = arith.divf %156, %157 : vector<8x288xf32>
    %159 = vector.extract_strided_slice %152 {offsets = [0, 288], sizes = [8, 96], strides = [1, 1]} : vector<8x384xf32> to vector<8x96xf32>
    %160 = math.tanh %159 : vector<8x96xf32>
    %161 = vector.extract_strided_slice %158 {offsets = [0, 0], sizes = [8, 96], strides = [1, 1]} : vector<8x288xf32> to vector<8x96xf32>
    %162 = vector.extract_strided_slice %158 {offsets = [0, 96], sizes = [8, 96], strides = [1, 1]} : vector<8x288xf32> to vector<8x96xf32>
    %163 = vector.extract_strided_slice %158 {offsets = [0, 192], sizes = [8, 96], strides = [1, 1]} : vector<8x288xf32> to vector<8x96xf32>
    %164 = arith.mulf %162, %146 : vector<8x96xf32>
    %165 = arith.mulf %161, %160 : vector<8x96xf32>
    %166 = arith.addf %164, %165 : vector<8x96xf32>
    %167 = math.tanh %166 : vector<8x96xf32>
    %168 = arith.mulf %163, %167 : vector<8x96xf32>
    %c0_52 = arith.constant 0 : index
    %c0_53 = arith.constant 0 : index
    %169 = vector.load %arg14[%c0_52, %c0_53] : memref<8x96xf32, #tpu.memory_space<vmem>>, vector<8x96xf32>
    tpu.vector_store %arg14[%c0_52, %c0_53], %168 {strides = array<i32>} : memref<8x96xf32, #tpu.memory_space<vmem>>, vector<8x96xf32>,
    %c0_54 = arith.constant 0 : index
    %c0_55 = arith.constant 0 : index
    %170 = vector.load %arg15[%c0_54, %c0_55] : memref<8x96xf32, #tpu.memory_space<vmem>>, vector<8x96xf32>
    tpu.vector_store %arg15[%c0_54, %c0_55], %166 {strides = array<i32>} : memref<8x96xf32, #tpu.memory_space<vmem>>, vector<8x96xf32>,
    %171 = tpu.concatenate %28, %48, %68, %88, %108, %128, %148, %168 in 0 : vector<8x96xf32>, vector<8x96xf32>, vector<8x96xf32>, vector<8x96xf32>, vector<8x96xf32>, vector<8x96xf32>, vector<8x96xf32>, vector<8x96xf32> -> vector<64x96xf32>
    %c0_56 = arith.constant 0 : index
    %c0_57 = arith.constant 0 : index
    %172 = vector.load %arg7[%c0_56, %c0_57] : memref<96x192xf32, #tpu.memory_space<vmem>>, vector<96x192xf32>
    %cst_58 = arith.constant dense<0.000000e+00> : vector<64x192xf32>
    %173 = tpu.matmul %171, %172, %cst_58 {dimension_numbers = #tpu.dot_dimension_numbers<[1], [0], [0], [1], [0, 0, 1, 1], [], []>} : vector<64x96xf32>, vector<96x192xf32>, vector<64x192xf32> -> vector<64x192xf32>
    %c0_59 = arith.constant 0 : index
    %c0_60 = arith.constant 0 : index
    %174 = vector.load %arg8[%c0_59, %c0_60] : memref<1x192xf32, #tpu.memory_space<vmem>>, vector<1x192xf32>
    %175 = vector.broadcast %174 : vector<1x192xf32> to vector<64x192xf32>
    %176 = arith.addf %173, %175 : vector<64x192xf32>
    %cst_61 = arith.constant 0.000000e+00 : f32
    %177 = vector.broadcast %cst_61 : f32 to vector<64x192xf32>
    %178 = arith.maximumf %176, %177 : vector<64x192xf32>
    %c0_62 = arith.constant 0 : index
    %c0_63 = arith.constant 0 : index
    %179 = vector.load %arg9[%c0_62, %c0_63] : memref<192x192xf32, #tpu.memory_space<vmem>>, vector<192x192xf32>
    %cst_64 = arith.constant dense<0.000000e+00> : vector<64x192xf32>
    %180 = tpu.matmul %178, %179, %cst_64 {dimension_numbers = #tpu.dot_dimension_numbers<[1], [0], [0], [1], [0, 0, 1, 1], [], []>} : vector<64x192xf32>, vector<192x192xf32>, vector<64x192xf32> -> vector<64x192xf32>
    %c0_65 = arith.constant 0 : index
    %c0_66 = arith.constant 0 : index
    %181 = vector.load %arg10[%c0_65, %c0_66] : memref<1x192xf32, #tpu.memory_space<vmem>>, vector<1x192xf32>
    %182 = vector.broadcast %181 : vector<1x192xf32> to vector<64x192xf32>
    %183 = arith.addf %180, %182 : vector<64x192xf32>
    %cst_67 = arith.constant 0.000000e+00 : f32
    %184 = vector.broadcast %cst_67 : f32 to vector<64x192xf32>
    %185 = arith.maximumf %183, %184 : vector<64x192xf32>
    %c0_68 = arith.constant 0 : index
    %c0_69 = arith.constant 0 : index
    %186 = vector.load %arg11[%c0_68, %c0_69] : memref<1x192xf32, #tpu.memory_space<vmem>>, vector<1x192xf32>
    %cst_70 = arith.constant dense<0.000000e+00> : vector<1x64xf32>
    %187 = tpu.matmul %186, %185, %cst_70 {dimension_numbers = #tpu.dot_dimension_numbers<[1], [1], [0], [0], [0, 0, 1, 0], [], []>} : vector<1x192xf32>, vector<64x192xf32>, vector<1x64xf32> -> vector<1x64xf32>
    %c0_71 = arith.constant 0 : index
    %c0_72 = arith.constant 0 : index
    %188 = vector.load %arg12[%c0_71, %c0_72] : memref<1x1xf32, #tpu.memory_space<vmem>>, vector<1x1xf32>
    %189 = vector.broadcast %188 : vector<1x1xf32> to vector<1x64xf32>
    %190 = arith.addf %187, %189 : vector<1x64xf32>
    %c0_73 = arith.constant 0 : index
    %c0_74 = arith.constant 0 : index
    %191 = vector.load %arg13[%c0_73, %c0_74] : memref<1x64xf32, #tpu.memory_space<vmem>>, vector<1x64xf32>
    tpu.vector_store %arg13[%c0_73, %c0_74], %190 {strides = array<i32>} : memref<1x64xf32, #tpu.memory_space<vmem>>, vector<1x64xf32>,
    return
  }
  func.func @transform_0(%arg0: i32) -> (i32, i32) {
    %c0_i32 = arith.constant 0 : i32
    %c0_i32_0 = arith.constant 0 : i32
    %c0_i32_1 = arith.constant 0 : i32
    return %c0_i32, %c0_i32_0 : i32, i32
  }
  func.func @transform_1(%arg0: i32) -> (i32, i32) {
    %c0_i32 = arith.constant 0 : i32
    %c0_i32_0 = arith.constant 0 : i32
    %c0_i32_1 = arith.constant 0 : i32
    return %c0_i32, %c0_i32_0 : i32, i32
  }
  func.func @transform_2(%arg0: i32) -> (i32, i32) {
    %c0_i32 = arith.constant 0 : i32
    %c0_i32_0 = arith.constant 0 : i32
    %c0_i32_1 = arith.constant 0 : i32
    return %c0_i32, %c0_i32_0 : i32, i32
  }
  func.func @transform_3(%arg0: i32) -> (i32, i32) {
    %c0_i32 = arith.constant 0 : i32
    %c0_i32_0 = arith.constant 0 : i32
    %c0_i32_1 = arith.constant 0 : i32
    return %c0_i32, %c0_i32_0 : i32, i32
  }
  func.func @transform_4(%arg0: i32) -> (i32, i32) {
    %c0_i32 = arith.constant 0 : i32
    %c0_i32_0 = arith.constant 0 : i32
    %c0_i32_1 = arith.constant 0 : i32
    return %c0_i32, %c0_i32_0 : i32, i32
  }
  func.func @transform_5(%arg0: i32) -> (i32, i32) {
    %c0_i32 = arith.constant 0 : i32
    %c0_i32_0 = arith.constant 0 : i32
    %c0_i32_1 = arith.constant 0 : i32
    return %c0_i32, %c0_i32_0 : i32, i32
  }
  func.func @transform_6(%arg0: i32) -> (i32, i32) {
    %c0_i32 = arith.constant 0 : i32
    %c0_i32_0 = arith.constant 0 : i32
    %c0_i32_1 = arith.constant 0 : i32
    return %c0_i32, %c0_i32_0 : i32, i32
  }
  func.func @transform_7(%arg0: i32) -> (i32, i32) {
    %c0_i32 = arith.constant 0 : i32
    %c0_i32_0 = arith.constant 0 : i32
    %c0_i32_1 = arith.constant 0 : i32
    return %c0_i32, %c0_i32_0 : i32, i32
  }
  func.func @transform_8(%arg0: i32) -> (i32, i32) {
    %c0_i32 = arith.constant 0 : i32
    %c0_i32_0 = arith.constant 0 : i32
    %c0_i32_1 = arith.constant 0 : i32
    return %c0_i32, %c0_i32_0 : i32, i32
  }
  func.func @transform_9(%arg0: i32) -> (i32, i32) {
    %c0_i32 = arith.constant 0 : i32
    %c0_i32_0 = arith.constant 0 : i32
    %c0_i32_1 = arith.constant 0 : i32
    return %c0_i32, %c0_i32_0 : i32, i32
  }
  func.func @transform_10(%arg0: i32) -> (i32, i32) {
    %c0_i32 = arith.constant 0 : i32
    %c0_i32_0 = arith.constant 0 : i32
    %c0_i32_1 = arith.constant 0 : i32
    return %c0_i32, %c0_i32_0 : i32, i32
  }
  func.func @transform_11(%arg0: i32) -> (i32, i32) {
    %c0_i32 = arith.constant 0 : i32
    %c0_i32_0 = arith.constant 0 : i32
    %c0_i32_1 = arith.constant 0 : i32
    return %c0_i32, %c0_i32_0 : i32, i32
  }
  func.func @transform_12(%arg0: i32) -> (i32, i32) {
    %c0_i32 = arith.constant 0 : i32
    %c0_i32_0 = arith.constant 0 : i32
    %c0_i32_1 = arith.constant 0 : i32
    return %c0_i32, %c0_i32_0 : i32, i32
  }
  func.func @transform_13(%arg0: i32) -> (i32, i32) {
    %c0_i32 = arith.constant 0 : i32
    %c0_i32_0 = arith.constant 0 : i32
    %c0_i32_1 = arith.constant 0 : i32
    return %c0_i32, %c0_i32_0 : i32, i32
  }
  func.func @transform_14(%arg0: i32) -> (i32, i32) {
    %c0_i32 = arith.constant 0 : i32
    %c0_i32_0 = arith.constant 0 : i32
    %c0_i32_1 = arith.constant 0 : i32
    return %c0_i32, %c0_i32_0 : i32, i32
  }
}

</mosaic_0001>

<llo_original>
// kernel: tpu_custom_call.1
$region0: #{tpu_custom_call.1}
  #allocation0 [shape = 'u32[]', space=smem, size = 0x4, offset = 0x4, fixed_abs, tag = 'smem constant byte address 0x4 - core index']
  #allocation1 [shape = 'u32[72,128]{1,0:T(1,128)}', space=vmem, size = 0x9000, scoped, tag = 'internal scratch']
  #allocation2 [shape = 'f32[64,384]{1,0:T(8,128)}', space=vmem, size = 0x18000, scoped, tag = 'scratch operand']
  #allocation3 [shape = 'f32[1,1]{1,0:T(1,128)S(1)}', space=vmem, size = 0x200, scoped, tag = 'scoped memory for tpu_custom_call.1']
  %s0 = inlined_call_operand.vmem [shape: f32[64,16], index: 0, kind: input, shape index: {}]
  %s1 = inlined_call_operand.vmem [shape: f32[8,96], index: 1, kind: input, shape index: {}]
  %s2 = inlined_call_operand.vmem [shape: f32[8,96], index: 2, kind: input, shape index: {}]
  %s3 = inlined_call_operand.vmem [shape: f32[16,384], index: 3, kind: input, shape index: {}]
  %s4 = inlined_call_operand.hbm [shape: f32[96,384], index: 4, kind: input, shape index: {}]
  %s5 = inlined_call_operand.vmem [shape: f32[1,384], index: 5, kind: input, shape index: {}]
  %s6 = inlined_call_operand.hbm [shape: f32[96,192], index: 6, kind: input, shape index: {}]
  %s7 = inlined_call_operand.vmem [shape: f32[1,192], index: 7, kind: input, shape index: {}]
  %s8 = inlined_call_operand.hbm [shape: f32[192,192], index: 8, kind: input, shape index: {}]
  %s9 = inlined_call_operand.vmem [shape: f32[1,192], index: 9, kind: input, shape index: {}]
  %s10 = inlined_call_operand.vmem [shape: f32[1,192], index: 10, kind: input, shape index: {}]
  %s11 = inlined_call_operand.<no memory space> [shape: f32[1,1], index: 11, kind: input, shape index: {}]
  %s12 = inlined_call_operand.hbm [shape: f32[1,64], index: 12, kind: output, shape index: {0}]
  %s13 = inlined_call_operand.hbm [shape: f32[8,96], index: 13, kind: output, shape index: {1}]
  %s14 = inlined_call_operand.hbm [shape: f32[8,96], index: 14, kind: output, shape index: {2}]
  %15 = xla_tuple %s12, %s13, %s14
  %s16 = sld [smem:[#allocation0]]
  $region86: #{tpu_custom_call.1} parent=0
    _
  %s18 = ssub.s32 1, %s16
  %s19 = scalar_select 0, %s18, %s16
  %v20 = vstv %s11
  %21 = vst [vmem:[#allocation3] sm:$0x1] %v20
  $region1: #{tpu_custom_call.1} parent=0
    #allocation4 [shape = 'u8[147456]{0}', space=vmem, size = 0x24000, scoped, tag = 'input window, operand 4, single buffered']
    #allocation5 [shape = 's32[1]{0}', space=sflag, size = 0x4, scoped, tag = 'scoped memory for tpu_custom_call.1']
    #allocation6 [shape = 's32[1]{0}', space=sflag, size = 0x4, scoped, tag = 'scoped memory for tpu_custom_call.1']
    #allocation7 [shape = 'u8[98304]{0}', space=vmem, size = 0x18000, scoped, tag = 'input window, operand 6, single buffered']
    #allocation8 [shape = 's32[1]{0}', space=sflag, size = 0x4, scoped, tag = 'scoped memory for tpu_custom_call.1']
    #allocation9 [shape = 'u8[196608]{0}', space=vmem, size = 0x30000, scoped, tag = 'input window, operand 8, single buffered']
    #allocation10 [shape = 'u8[512]{0}', space=vmem, size = 0x400, scoped, tag = 'output window, operand 0, single buffered']
    #allocation11 [shape = 'u8[4096]{0}', space=vmem, size = 0x1000, scoped, tag = 'output window, operand 1, single buffered']
    #allocation12 [shape = 's32[1]{0}', space=sflag, size = 0x4, scoped, tag = 'scoped memory for tpu_custom_call.1']
    #allocation13 [shape = 'u8[4096]{0}', space=vmem, size = 0x1000, scoped, tag = 'output window, operand 2, single buffered']
    %22 = vsyncpa [#allocation5], 0
    %23 = vsyncpa [#allocation8], 0
    %24 = vsyncpa [#allocation6], 0
    %25 = vsyncpa [#allocation12], 0
    // Predicated region
    $region2: #{tpu_custom_call.1} parent=1 // pred_check
      _
    $region3: #{tpu_custom_call.1} parent=1 // pred_check_branch
      %27 = sbr.rel (0) target = $region5
    $region4: #{tpu_custom_call.1} parent=1 // pred_region
      _
    $region5: #{tpu_custom_call.1} parent=1 // pred_fallthru
      _
    // Predicated region
    $region6: #{tpu_custom_call.1} parent=1 // pred_check
      _
    $region7: #{tpu_custom_call.1} parent=1 // pred_check_branch
      %29 = sbr.rel (0) target = $region9
    $region8: #{tpu_custom_call.1} parent=1 // pred_region
      _
    $region9: #{tpu_custom_call.1} parent=1 // pred_fallthru
      _
    // Predicated region
    $region10: #{tpu_custom_call.1} parent=1 // pred_check
      _
    $region11: #{tpu_custom_call.1} parent=1 // pred_check_branch
      %31 = sbr.rel (0) target = $region13
    $region12: #{tpu_custom_call.1} parent=1 // pred_region
      _
    $region13: #{tpu_custom_call.1} parent=1 // pred_fallthru
      _
    // Predicated region
    $region14: #{tpu_custom_call.1} parent=1 // pred_check
      _
    $region15: #{tpu_custom_call.1} parent=1 // pred_check_branch
      %33 = sbr.rel (0) target = $region17
    $region16: #{tpu_custom_call.1} parent=1 // pred_region
      _
    $region17: #{tpu_custom_call.1} parent=1 // pred_fallthru
      _
    // Predicated region
    $region18: #{tpu_custom_call.1} parent=1 // pred_check
      _
    $region19: #{tpu_custom_call.1} parent=1 // pred_check_branch
      %35 = sbr.rel (0) target = $region21
    $region20: #{tpu_custom_call.1} parent=1 // pred_region
      %37 = vsyncadd [#allocation5], 0
      %s38 = sshll.u32 %s4, 4
      %s39 = int_to_ptr.hbm [resolvable:$true] %s38
      %s40 = sshll.u32 [#allocation4], 4
      %s41 = int_to_ptr.vmem [resolvable:$true] %s40
      %46 = dma.hbm_to_vmem [thread:$0]  %s39, 4608, %s41, [#allocation5], 384, 384, 24
    $region21: #{tpu_custom_call.1} parent=1 // pred_fallthru
      _
    // Predicated region
    $region22: #{tpu_custom_call.1} parent=1 // pred_check
      _
    $region23: #{tpu_custom_call.1} parent=1 // pred_check_branch
      %48 = sbr.rel (0) target = $region25
    $region24: #{tpu_custom_call.1} parent=1 // pred_region
      _
    $region25: #{tpu_custom_call.1} parent=1 // pred_fallthru
      _
    // Predicated region
    $region26: #{tpu_custom_call.1} parent=1 // pred_check
      _
    $region27: #{tpu_custom_call.1} parent=1 // pred_check_branch
      %50 = sbr.rel (0) target = $region29
    $region28: #{tpu_custom_call.1} parent=1 // pred_region
      %52 = vsyncadd [#allocation8], 0
      %s53 = sshll.u32 %s6, 4
      %s54 = int_to_ptr.hbm [resolvable:$true] %s53
      %s55 = sshll.u32 [#allocation7], 4
      %s56 = int_to_ptr.vmem [resolvable:$true] %s55
      %61 = dma.hbm_to_vmem [thread:$0]  %s54, 3072, %s56, [#allocation8], 256, 256, 16
    $region29: #{tpu_custom_call.1} parent=1 // pred_fallthru
      _
    // Predicated region
    $region30: #{tpu_custom_call.1} parent=1 // pred_check
      _
    $region31: #{tpu_custom_call.1} parent=1 // pred_check_branch
      %63 = sbr.rel (0) target = $region33
    $region32: #{tpu_custom_call.1} parent=1 // pred_region
      _
    $region33: #{tpu_custom_call.1} parent=1 // pred_fallthru
      _
    // Predicated region
    $region34: #{tpu_custom_call.1} parent=1 // pred_check
      _
    $region35: #{tpu_custom_call.1} parent=1 // pred_check_branch
      %65 = sbr.rel (0) target = $region37
    $region36: #{tpu_custom_call.1} parent=1 // pred_region
      %67 = vsyncadd [#allocation8], 0
      %s68 = sshll.u32 %s8, 4
      %s69 = int_to_ptr.hbm [resolvable:$true] %s68
      %s70 = sshll.u32 [#allocation9], 4
      %s71 = int_to_ptr.vmem [resolvable:$true] %s70
      %76 = dma.hbm_to_vmem [thread:$0]  %s69, 6144, %s71, [#allocation8], 256, 256, 16
    $region37: #{tpu_custom_call.1} parent=1 // pred_fallthru
      _
    // Predicated region
    $region38: #{tpu_custom_call.1} parent=1 // pred_check
      _
    $region39: #{tpu_custom_call.1} parent=1 // pred_check_branch
      %78 = sbr.rel (0) target = $region41
    $region40: #{tpu_custom_call.1} parent=1 // pred_region
      _
    $region41: #{tpu_custom_call.1} parent=1 // pred_fallthru
      _
    // Predicated region
    $region42: #{tpu_custom_call.1} parent=1 // pred_check
      _
    $region43: #{tpu_custom_call.1} parent=1 // pred_check_branch
      %80 = sbr.rel (0) target = $region45
    $region44: #{tpu_custom_call.1} parent=1 // pred_region
      _
    $region45: #{tpu_custom_call.1} parent=1 // pred_fallthru
      _
    // Predicated region
    $region46: #{tpu_custom_call.1} parent=1 // pred_check
      _
    $region47: #{tpu_custom_call.1} parent=1 // pred_check_branch
      %82 = sbr.rel (0) target = $region49
    $region48: #{tpu_custom_call.1} parent=1 // pred_region
      _
    $region49: #{tpu_custom_call.1} parent=1 // pred_fallthru
      _
    // Predicated region
    $region50: #{tpu_custom_call.1} parent=1 // pred_check
      _
    $region51: #{tpu_custom_call.1} parent=1 // pred_check_branch
      %84 = sbr.rel (0) target = $region53
    $region52: #{tpu_custom_call.1} parent=1 // pred_region
      %86 = dma.done [#allocation5], 4608
    $region53: #{tpu_custom_call.1} parent=1 // pred_fallthru
      _
    // Predicated region
    $region54: #{tpu_custom_call.1} parent=1 // pred_check
      _
    $region55: #{tpu_custom_call.1} parent=1 // pred_check_branch
      %88 = sbr.rel (0) target = $region57
    $region56: #{tpu_custom_call.1} parent=1 // pred_region
      %90 = dma.done [#allocation8], 3072
    $region57: #{tpu_custom_call.1} parent=1 // pred_fallthru
      _
    // Predicated region
    $region58: #{tpu_custom_call.1} parent=1 // pred_check
      _
    $region59: #{tpu_custom_call.1} parent=1 // pred_check_branch
      %92 = sbr.rel (0) target = $region61
    $region60: #{tpu_custom_call.1} parent=1 // pred_region
      %94 = dma.done [#allocation8], 6144
    $region61: #{tpu_custom_call.1} parent=1 // pred_fallthru
      _
    %v95 = vld [vmem:[%s0] sm:$0xff]
    %v96 = vld [vmem:[%s0 + $0x8] sm:$0xff]
    %v97 = vld [vmem:[%s0 + $0x10] sm:$0xff]
    %v98 = vld [vmem:[%s0 + $0x18] sm:$0xff]
    %v99 = vld [vmem:[%s0 + $0x20] sm:$0xff]
    %v100 = vld [vmem:[%s0 + $0x28] sm:$0xff]
    %v101 = vld [vmem:[%s0 + $0x30] sm:$0xff]
    %v102 = vld [vmem:[%s0 + $0x38] sm:$0xff]
    %v103 = vld [vmem:[%s3] sm:$0xff]
    %v104 = vld [vmem:[%s3 + $0x8] sm:$0xff]
    %v105 = vld [vmem:[%s3 + $0x10] sm:$0xff]
    %v106 = vld [vmem:[%s3 + $0x18] sm:$0xff]
    %v107 = vld [vmem:[%s3 + $0x20] sm:$0xff]
    %v108 = vld [vmem:[%s3 + $0x28] sm:$0xff]
    %v109 = vld [vmem:[%s5] sm:$0x7]
    %v111 = vperm.slane %v109, 0
    %v112 = vperm.slane %v109, 1
    %v113 = vperm.slane %v109, 2
    %vm117 = vcmask 130048
    %v119 = vsel %vm117, %v95, 0
    %v122 = vsel %vm117, %v96, 0
    %v125 = vsel %vm117, %v97, 0
    %v128 = vsel %vm117, %v98, 0
    %v131 = vsel %vm117, %v99, 0
    %v134 = vsel %vm117, %v100, 0
    %v137 = vsel %vm117, %v101, 0
    %v140 = vsel %vm117, %v102, 0
    %142 = vmatpush.msra.mxu0 0.0
    %143 = vmatpush.msra.mxu0 0.0
    %144 = vmatpush.msra.mxu0 0.0
    %145 = vmatpush.msra.mxu0 0.0
    %146 = vmatpush.msra.mxu0 0.0
    %147 = vmatpush.msra.mxu0 0.0
    %148 = vmatpush.msra.mxu0 0.0
    %149 = vmatpush.msra.mxu0 0.0
    %150 = vmatpush.msra.mxu0 0.0
    %151 = vmatpush.msra.mxu0 0.0
    %152 = vmatpush.msra.mxu0 0.0
    %153 = vmatpush.msra.mxu0 0.0
    %154 = vmatpush.msra.mxu0 0.0
    %155 = vmatpush.msra.mxu0 0.0
    %156 = vmatpush.msra.mxu0 %v106
    %157 = vmatpush.msra.mxu0 %v103
    %158 = vmatmul.f32.gmra.mxu0 %v119
    %v159 = vpop.f32.mrf.mxu0
    %v160 = vadd.f32 %v111, %v159
    %161 = vmatmul.f32.gmra.mxu0 %v122
    %v162 = vpop.f32.mrf.mxu0
    %v163 = vadd.f32 %v111, %v162
    %164 = vmatmul.f32.gmra.mxu0 %v125
    %v165 = vpop.f32.mrf.mxu0
    %v166 = vadd.f32 %v111, %v165
    %167 = vmatmul.f32.gmra.mxu0 %v128
    %v168 = vpop.f32.mrf.mxu0
    %v169 = vadd.f32 %v111, %v168
    %170 = vmatmul.f32.gmra.mxu0 %v131
    %v171 = vpop.f32.mrf.mxu0
    %v172 = vadd.f32 %v111, %v171
    %173 = vmatmul.f32.gmra.mxu0 %v134
    %v174 = vpop.f32.mrf.mxu0
    %v175 = vadd.f32 %v111, %v174
    %176 = vmatmul.f32.gmra.mxu0 %v137
    %v177 = vpop.f32.mrf.mxu0
    %v178 = vadd.f32 %v111, %v177
    %179 = vmatmul.f32.gmra.mxu0 %v140
    %v180 = vpop.f32.mrf.mxu0
    %v181 = vadd.f32 %v111, %v180
    %182 = vdwg.mxu0
    %183 = vmatpush.msra.mxu0 0.0
    %184 = vmatpush.msra.mxu0 0.0
    %185 = vmatpush.msra.mxu0 0.0
    %186 = vmatpush.msra.mxu0 0.0
    %187 = vmatpush.msra.mxu0 0.0
    %188 = vmatpush.msra.mxu0 0.0
    %189 = vmatpush.msra.mxu0 0.0
    %190 = vmatpush.msra.mxu0 0.0
    %191 = vmatpush.msra.mxu0 0.0
    %192 = vmatpush.msra.mxu0 0.0
    %193 = vmatpush.msra.mxu0 0.0
    %194 = vmatpush.msra.mxu0 0.0
    %195 = vmatpush.msra.mxu0 0.0
    %196 = vmatpush.msra.mxu0 0.0
    %197 = vmatpush.msra.mxu0 %v107
    %198 = vmatpush.msra.mxu0 %v104
    %199 = vmatmul.f32.gmra.mxu0 %v119
    %v200 = vpop.f32.mrf.mxu0
    %v201 = vadd.f32 %v112, %v200
    %202 = vmatmul.f32.gmra.mxu0 %v122
    %v203 = vpop.f32.mrf.mxu0
    %v204 = vadd.f32 %v112, %v203
    %205 = vmatmul.f32.gmra.mxu0 %v125
    %v206 = vpop.f32.mrf.mxu0
    %v207 = vadd.f32 %v112, %v206
    %208 = vmatmul.f32.gmra.mxu0 %v128
    %v209 = vpop.f32.mrf.mxu0
    %v210 = vadd.f32 %v112, %v209
    %211 = vmatmul.f32.gmra.mxu0 %v131
    %v212 = vpop.f32.mrf.mxu0
    %v213 = vadd.f32 %v112, %v212
    %214 = vmatmul.f32.gmra.mxu0 %v134
    %v215 = vpop.f32.mrf.mxu0
    %v216 = vadd.f32 %v112, %v215
    %217 = vmatmul.f32.gmra.mxu0 %v137
    %v218 = vpop.f32.mrf.mxu0
    %v219 = vadd.f32 %v112, %v218
    %220 = vmatmul.f32.gmra.mxu0 %v140
    %v221 = vpop.f32.mrf.mxu0
    %v222 = vadd.f32 %v112, %v221
    %223 = vdwg.mxu0
    %224 = vmatpush.msra.mxu0 0.0
    %225 = vmatpush.msra.mxu0 0.0
    %226 = vmatpush.msra.mxu0 0.0
    %227 = vmatpush.msra.mxu0 0.0
    %228 = vmatpush.msra.mxu0 0.0
    %229 = vmatpush.msra.mxu0 0.0
    %230 = vmatpush.msra.mxu0 0.0
    %231 = vmatpush.msra.mxu0 0.0
    %232 = vmatpush.msra.mxu0 0.0
    %233 = vmatpush.msra.mxu0 0.0
    %234 = vmatpush.msra.mxu0 0.0
    %235 = vmatpush.msra.mxu0 0.0
    %236 = vmatpush.msra.mxu0 0.0
    %237 = vmatpush.msra.mxu0 0.0
    %238 = vmatpush.msra.mxu0 %v108
    %239 = vmatpush.msra.mxu0 %v105
    %240 = vmatmul.f32.gmra.mxu0 %v119
    %v241 = vpop.f32.mrf.mxu0
    %v242 = vadd.f32 %v113, %v241
    %243 = vmatmul.f32.gmra.mxu0 %v122
    %v244 = vpop.f32.mrf.mxu0
    %v245 = vadd.f32 %v113, %v244
    %246 = vmatmul.f32.gmra.mxu0 %v125
    %v247 = vpop.f32.mrf.mxu0
    %v248 = vadd.f32 %v113, %v247
    %249 = vmatmul.f32.gmra.mxu0 %v128
    %v250 = vpop.f32.mrf.mxu0
    %v251 = vadd.f32 %v113, %v250
    %252 = vmatmul.f32.gmra.mxu0 %v131
    %v253 = vpop.f32.mrf.mxu0
    %v254 = vadd.f32 %v113, %v253
    %255 = vmatmul.f32.gmra.mxu0 %v134
    %v256 = vpop.f32.mrf.mxu0
    %v257 = vadd.f32 %v113, %v256
    %258 = vmatmul.f32.gmra.mxu0 %v137
    %v259 = vpop.f32.mrf.mxu0
    %v260 = vadd.f32 %v113, %v259
    %261 = vmatmul.f32.gmra.mxu0 %v140
    %v262 = vpop.f32.mrf.mxu0
    %v263 = vadd.f32 %v113, %v262
    %264 = vdwg.mxu0
    %265 = vst [vmem:[#allocation2] sm:$0xff] %v160
    %266 = vst [vmem:[#allocation2 + $0x8] sm:$0xff] %v201
    %267 = vst [vmem:[#allocation2 + $0x10] sm:$0xff] %v242
    %268 = vst [vmem:[#allocation2 + $0x18] sm:$0xff] %v163
    %269 = vst [vmem:[#allocation2 + $0x20] sm:$0xff] %v204
    %270 = vst [vmem:[#allocation2 + $0x28] sm:$0xff] %v245
    %271 = vst [vmem:[#allocation2 + $0x30] sm:$0xff] %v166
    %272 = vst [vmem:[#allocation2 + $0x38] sm:$0xff] %v207
    %273 = vst [vmem:[#allocation2 + $0x40] sm:$0xff] %v248
    %274 = vst [vmem:[#allocation2 + $0x48] sm:$0xff] %v169
    %275 = vst [vmem:[#allocation2 + $0x50] sm:$0xff] %v210
    %276 = vst [vmem:[#allocation2 + $0x58] sm:$0xff] %v251
    %277 = vst [vmem:[#allocation2 + $0x60] sm:$0xff] %v172
    %278 = vst [vmem:[#allocation2 + $0x68] sm:$0xff] %v213
    %279 = vst [vmem:[#allocation2 + $0x70] sm:$0xff] %v254
    %280 = vst [vmem:[#allocation2 + $0x78] sm:$0xff] %v175
    %281 = vst [vmem:[#allocation2 + $0x80] sm:$0xff] %v216
    %282 = vst [vmem:[#allocation2 + $0x88] sm:$0xff] %v257
    %283 = vst [vmem:[#allocation2 + $0x90] sm:$0xff] %v178
    %284 = vst [vmem:[#allocation2 + $0x98] sm:$0xff] %v219
    %285 = vst [vmem:[#allocation2 + $0xa0] sm:$0xff] %v260
    %286 = vst [vmem:[#allocation2 + $0xa8] sm:$0xff] %v181
    %287 = vst [vmem:[#allocation2 + $0xb0] sm:$0xff] %v222
    %288 = vst [vmem:[#allocation2 + $0xb8] sm:$0xff] %v263
    %v289 = vld [vmem:[%s1] sm:$0xff]
    %v290 = vld [vmem:[%s2] sm:$0xff]
    %v291 = vld [vmem:[#allocation2] sm:$0xff]
    %v292 = vld [vmem:[#allocation2 + $0x8] sm:$0xff]
    %v293 = vld [vmem:[#allocation2 + $0x10] sm:$0xff]
    %v294 = vld [vmem:[#allocation4] sm:$0xff]
    %v295 = vld [vmem:[#allocation4 + $0x8] sm:$0xff]
    %v296 = vld [vmem:[#allocation4 + $0x10] sm:$0xff]
    %v297 = vld [vmem:[#allocation4 + $0x18] sm:$0xff]
    %v298 = vld [vmem:[#allocation4 + $0x20] sm:$0xff]
    %v299 = vld [vmem:[#allocation4 + $0x28] sm:$0xff]
    %v300 = vld [vmem:[#allocation4 + $0x30] sm:$0xff]
    %v301 = vld [vmem:[#allocation4 + $0x38] sm:$0xff]
    %v302 = vld [vmem:[#allocation4 + $0x40] sm:$0xff]
    %v303 = vld [vmem:[#allocation4 + $0x48] sm:$0xff]
    %v304 = vld [vmem:[#allocation4 + $0x50] sm:$0xff]
    %v305 = vld [vmem:[#allocation4 + $0x58] sm:$0xff]
    %v306 = vld [vmem:[#allocation4 + $0x60] sm:$0xff]
    %v307 = vld [vmem:[#allocation4 + $0x68] sm:$0xff]
    %v308 = vld [vmem:[#allocation4 + $0x70] sm:$0xff]
    %v309 = vld [vmem:[#allocation4 + $0x78] sm:$0xff]
    %v310 = vld [vmem:[#allocation4 + $0x80] sm:$0xff]
    %v311 = vld [vmem:[#allocation4 + $0x88] sm:$0xff]
    %v312 = vld [vmem:[#allocation4 + $0x90] sm:$0xff]
    %v313 = vld [vmem:[#allocation4 + $0x98] sm:$0xff]
    %v314 = vld [vmem:[#allocation4 + $0xa0] sm:$0xff]
    %v315 = vld [vmem:[#allocation4 + $0xa8] sm:$0xff]
    %v316 = vld [vmem:[#allocation4 + $0xb0] sm:$0xff]
    %v317 = vld [vmem:[#allocation4 + $0xb8] sm:$0xff]
    %v318 = vld [vmem:[#allocation4 + $0xc0] sm:$0xff]
    %v319 = vld [vmem:[#allocation4 + $0xc8] sm:$0xff]
    %v320 = vld [vmem:[#allocation4 + $0xd0] sm:$0xff]
    %v321 = vld [vmem:[#allocation4 + $0xd8] sm:$0xff]
    %v322 = vld [vmem:[#allocation4 + $0xe0] sm:$0xff]
    %v323 = vld [vmem:[#allocation4 + $0xe8] sm:$0xff]
    %v324 = vld [vmem:[#allocation4 + $0xf0] sm:$0xff]
    %v325 = vld [vmem:[#allocation4 + $0xf8] sm:$0xff]
    %v326 = vld [vmem:[#allocation4 + $0x100] sm:$0xff]
    %v327 = vld [vmem:[#allocation4 + $0x108] sm:$0xff]
    %v328 = vld [vmem:[#allocation4 + $0x110] sm:$0xff]
    %v329 = vld [vmem:[#allocation4 + $0x118] sm:$0xff]
    %vm330 = vcmask 785408
    %v332 = vsel %vm330, %v289, 0
    %334 = vmatpush.msra.mxu0 0.0
    %335 = vmatpush.msra.mxu0 0.0
    %336 = vmatpush.msra.mxu0 0.0
    %337 = vmatpush.msra.mxu0 0.0
    %338 = vmatpush.msra.mxu0 %v327
    %339 = vmatpush.msra.mxu0 %v324
    %340 = vmatpush.msra.mxu0 %v321
    %341 = vmatpush.msra.mxu0 %v318
    %342 = vmatpush.msra.mxu0 %v315
    %343 = vmatpush.msra.mxu0 %v312
    %344 = vmatpush.msra.mxu0 %v309
    %345 = vmatpush.msra.mxu0 %v306
    %346 = vmatpush.msra.mxu0 %v303
    %347 = vmatpush.msra.mxu0 %v300
    %348 = vmatpush.msra.mxu0 %v297
    %349 = vmatpush.msra.mxu0 %v294
    %350 = vmatmul.f32.gmra.mxu0 %v332
    %v351 = vpop.f32.mrf.mxu0
    %v352 = vadd.f32 0.0, %v351
    %353 = vdwg.mxu0
    %354 = vmatpush.msra.mxu0 0.0
    %355 = vmatpush.msra.mxu0 0.0
    %356 = vmatpush.msra.mxu0 0.0
    %357 = vmatpush.msra.mxu0 0.0
    %358 = vmatpush.msra.mxu0 %v328
    %359 = vmatpush.msra.mxu0 %v325
    %360 = vmatpush.msra.mxu0 %v322
    %361 = vmatpush.msra.mxu0 %v319
    %362 = vmatpush.msra.mxu0 %v316
    %363 = vmatpush.msra.mxu0 %v313
    %364 = vmatpush.msra.mxu0 %v310
    %365 = vmatpush.msra.mxu0 %v307
    %366 = vmatpush.msra.mxu0 %v304
    %367 = vmatpush.msra.mxu0 %v301
    %368 = vmatpush.msra.mxu0 %v298
    %369 = vmatpush.msra.mxu0 %v295
    %370 = vmatmul.f32.gmra.mxu0 %v332
    %v371 = vpop.f32.mrf.mxu0
    %v372 = vadd.f32 0.0, %v371
    %373 = vdwg.mxu0
    %374 = vmatpush.msra.mxu0 0.0
    %375 = vmatpush.msra.mxu0 0.0
    %376 = vmatpush.msra.mxu0 0.0
    %377 = vmatpush.msra.mxu0 0.0
    %378 = vmatpush.msra.mxu0 %v329
    %379 = vmatpush.msra.mxu0 %v326
    %380 = vmatpush.msra.mxu0 %v323
    %381 = vmatpush.msra.mxu0 %v320
    %382 = vmatpush.msra.mxu0 %v317
    %383 = vmatpush.msra.mxu0 %v314
    %384 = vmatpush.msra.mxu0 %v311
    %385 = vmatpush.msra.mxu0 %v308
    %386 = vmatpush.msra.mxu0 %v305
    %387 = vmatpush.msra.mxu0 %v302
    %388 = vmatpush.msra.mxu0 %v299
    %389 = vmatpush.msra.mxu0 %v296
    %390 = vmatmul.f32.gmra.mxu0 %v332
    %v391 = vpop.f32.mrf.mxu0
    %v392 = vadd.f32 0.0, %v391
    %393 = vdwg.mxu0
    %v394 = vadd.f32 %v291, %v352
    %v395 = vadd.f32 %v292, %v372
    %v396 = vadd.f32 %v293, %v392
    %v397 = vxor.u32 %v394, 2147483648
    %v398 = vxor.u32 %v395, 2147483648
    %v399 = vxor.u32 %v396, 2147483648
    %v400 = vmul.f32 %v397, 1.442695
    %v401 = vpow.pop %v400
    %v402 = vmul.f32 %v398, 1.442695
    %v403 = vpow.pop %v402
    %v404 = vmul.f32 %v399, 1.442695
    %v405 = vpow.pop %v404
    %v406 = vadd.f32 %v401, 1.0
    %v407 = vadd.f32 %v403, 1.0
    %v408 = vadd.f32 %v405, 1.0
    %v409 = vrcp.pop %v406
    %v410 = vmul.f32 %v406, %v409
    %v411 = vsub.f32 1.0, %v410
    %v412 = vmul.f32 %v409, %v411
    %v413 = vadd.f32 %v409, %v412
    %vm414 = vweird.f32 %v406
    %vm415 = vweird.f32 %v409
    %vm416 = vmor %vm414, %vm415
    %v417 = vsel %vm416, %v409, %v413
    %v418 = vand.u32 2147483647, %v406
    %vm419 = vcmp.eq.f32.partialorder %v418, 8.507059e+37
    %v420 = vand.u32 %v406, 2147483648
    %v421 = vor.u32 1.1754944e-38, %v420
    %v422 = vsel %vm419, %v421, %v417
    %v423 = vmul.f32 1.0, %v422
    %v424 = vrcp.pop %v407
    %v425 = vmul.f32 %v407, %v424
    %v426 = vsub.f32 1.0, %v425
    %v427 = vmul.f32 %v424, %v426
    %v428 = vadd.f32 %v424, %v427
    %vm429 = vweird.f32 %v407
    %vm430 = vweird.f32 %v424
    %vm431 = vmor %vm429, %vm430
    %v432 = vsel %vm431, %v424, %v428
    %v433 = vand.u32 2147483647, %v407
    %vm434 = vcmp.eq.f32.partialorder %v433, 8.507059e+37
    %v435 = vand.u32 %v407, 2147483648
    %v436 = vor.u32 1.1754944e-38, %v435
    %v437 = vsel %vm434, %v436, %v432
    %v438 = vmul.f32 1.0, %v437
    %v439 = vrcp.pop %v408
    %v440 = vmul.f32 %v408, %v439
    %v441 = vsub.f32 1.0, %v440
    %v442 = vmul.f32 %v439, %v441
    %v443 = vadd.f32 %v439, %v442
    %vm444 = vweird.f32 %v408
    %vm445 = vweird.f32 %v439
    %vm446 = vmor %vm444, %vm445
    %v447 = vsel %vm446, %v439, %v443
    %v448 = vand.u32 2147483647, %v408
    %vm449 = vcmp.eq.f32.partialorder %v448, 8.507059e+37
    %v450 = vand.u32 %v408, 2147483648
    %v451 = vor.u32 1.1754944e-38, %v450
    %v452 = vsel %vm449, %v451, %v447
    %v453 = vmul.f32 1.0, %v452
    %v454 = vtanh.pop %v396
    %456 = vrot.lane.b32.xlu0 %v290, 96
    %v457 = vpop.permute.xlu0 %456
    %v459 = vmul.f32 %v423, %v457
    %v460 = vmul.f32 %v438, %v457
    %462 = vrot.lane.b32.xlu0 %v454, 96
    %v463 = vpop.permute.xlu0 %462
    %v465 = vmul.f32 %v423, %v463
    %467 = vrot.lane.b32.xlu0 %v465, 96
    %v468 = vpop.permute.xlu0 %467
    %v470 = vadd.f32 %v459, %v468
    %v471 = vadd.f32 %v460, %v468
    %v472 = vtanh.pop %v470
    %v473 = vtanh.pop %v471
    %476 = vrot.lane.b32.xlu0 %v472, 96
    %v477 = vpop.permute.xlu0 %476
    %478 = vrot.lane.b32.xlu0 %v473, 96
    %v479 = vpop.permute.xlu0 %478
    %v480 = vsel %vm330, %v477, %v479
    %v483 = vmul.f32 %v438, %v480
    %v484 = vmul.f32 %v453, %v479
    %v485 = vld [vmem:[#allocation2 + $0x18] sm:$0xff]
    %v486 = vld [vmem:[#allocation2 + $0x20] sm:$0xff]
    %v487 = vld [vmem:[#allocation2 + $0x28] sm:$0xff]
    %490 = vrot.lane.b32.xlu0 %v483, 64
    %v491 = vpop.permute.xlu0 %490
    %492 = vrot.lane.b32.xlu0 %v484, 64
    %v493 = vpop.permute.xlu0 %492
    %vm494 = vcmask 523264
    %v495 = vsel %vm494, %v491, %v493
    %v496 = vsel %vm330, %v495, 0
    %498 = vmatpush.msra.mxu0 0.0
    %499 = vmatpush.msra.mxu0 0.0
    %500 = vmatpush.msra.mxu0 0.0
    %501 = vmatpush.msra.mxu0 0.0
    %502 = vmatpush.msra.mxu0 %v327
    %503 = vmatpush.msra.mxu0 %v324
    %504 = vmatpush.msra.mxu0 %v321
    %505 = vmatpush.msra.mxu0 %v318
    %506 = vmatpush.msra.mxu0 %v315
    %507 = vmatpush.msra.mxu0 %v312
    %508 = vmatpush.msra.mxu0 %v309
    %509 = vmatpush.msra.mxu0 %v306
    %510 = vmatpush.msra.mxu0 %v303
    %511 = vmatpush.msra.mxu0 %v300
    %512 = vmatpush.msra.mxu0 %v297
    %513 = vmatpush.msra.mxu0 %v294
    %514 = vmatmul.f32.gmra.mxu0 %v496
    %v515 = vpop.f32.mrf.mxu0
    %v516 = vadd.f32 0.0, %v515
    %517 = vdwg.mxu0
    %518 = vmatpush.msra.mxu0 0.0
    %519 = vmatpush.msra.mxu0 0.0
    %520 = vmatpush.msra.mxu0 0.0
    %521 = vmatpush.msra.mxu0 0.0
    %522 = vmatpush.msra.mxu0 %v328
    %523 = vmatpush.msra.mxu0 %v325
    %524 = vmatpush.msra.mxu0 %v322
    %525 = vmatpush.msra.mxu0 %v319
    %526 = vmatpush.msra.mxu0 %v316
    %527 = vmatpush.msra.mxu0 %v313
    %528 = vmatpush.msra.mxu0 %v310
    %529 = vmatpush.msra.mxu0 %v307
    %530 = vmatpush.msra.mxu0 %v304
    %531 = vmatpush.msra.mxu0 %v301
    %532 = vmatpush.msra.mxu0 %v298
    %533 = vmatpush.msra.mxu0 %v295
    %534 = vmatmul.f32.gmra.mxu0 %v496
    %v535 = vpop.f32.mrf.mxu0
    %v536 = vadd.f32 0.0, %v535
    %537 = vdwg.mxu0
    %538 = vmatpush.msra.mxu0 0.0
    %539 = vmatpush.msra.mxu0 0.0
    %540 = vmatpush.msra.mxu0 0.0
    %541 = vmatpush.msra.mxu0 0.0
    %542 = vmatpush.msra.mxu0 %v329
    %543 = vmatpush.msra.mxu0 %v326
    %544 = vmatpush.msra.mxu0 %v323
    %545 = vmatpush.msra.mxu0 %v320
    %546 = vmatpush.msra.mxu0 %v317
    %547 = vmatpush.msra.mxu0 %v314
    %548 = vmatpush.msra.mxu0 %v311
    %549 = vmatpush.msra.mxu0 %v308
    %550 = vmatpush.msra.mxu0 %v305
    %551 = vmatpush.msra.mxu0 %v302
    %552 = vmatpush.msra.mxu0 %v299
    %553 = vmatpush.msra.mxu0 %v296
    %554 = vmatmul.f32.gmra.mxu0 %v496
    %v555 = vpop.f32.mrf.mxu0
    %v556 = vadd.f32 0.0, %v555
    %557 = vdwg.mxu0
    %v558 = vadd.f32 %v485, %v516
    %v559 = vadd.f32 %v486, %v536
    %v560 = vadd.f32 %v487, %v556
    %v561 = vxor.u32 %v558, 2147483648
    %v562 = vxor.u32 %v559, 2147483648
    %v563 = vxor.u32 %v560, 2147483648
    %v564 = vmul.f32 %v561, 1.442695
    %v565 = vpow.pop %v564
    %v566 = vmul.f32 %v562, 1.442695
    %v567 = vpow.pop %v566
    %v568 = vmul.f32 %v563, 1.442695
    %v569 = vpow.pop %v568
    %v570 = vadd.f32 %v565, 1.0
    %v571 = vadd.f32 %v567, 1.0
    %v572 = vadd.f32 %v569, 1.0
    %v573 = vrcp.pop %v570
    %v574 = vmul.f32 %v570, %v573
    %v575 = vsub.f32 1.0, %v574
    %v576 = vmul.f32 %v573, %v575
    %v577 = vadd.f32 %v573, %v576
    %vm578 = vweird.f32 %v570
    %vm579 = vweird.f32 %v573
    %vm580 = vmor %vm578, %vm579
    %v581 = vsel %vm580, %v573, %v577
    %v582 = vand.u32 2147483647, %v570
    %vm583 = vcmp.eq.f32.partialorder %v582, 8.507059e+37
    %v584 = vand.u32 %v570, 2147483648
    %v585 = vor.u32 1.1754944e-38, %v584
    %v586 = vsel %vm583, %v585, %v581
    %v587 = vmul.f32 1.0, %v586
    %v588 = vrcp.pop %v571
    %v589 = vmul.f32 %v571, %v588
    %v590 = vsub.f32 1.0, %v589
    %v591 = vmul.f32 %v588, %v590
    %v592 = vadd.f32 %v588, %v591
    %vm593 = vweird.f32 %v571
    %vm594 = vweird.f32 %v588
    %vm595 = vmor %vm593, %vm594
    %v596 = vsel %vm595, %v588, %v592
    %v597 = vand.u32 2147483647, %v571
    %vm598 = vcmp.eq.f32.partialorder %v597, 8.507059e+37
    %v599 = vand.u32 %v571, 2147483648
    %v600 = vor.u32 1.1754944e-38, %v599
    %v601 = vsel %vm598, %v600, %v596
    %v602 = vmul.f32 1.0, %v601
    %v603 = vrcp.pop %v572
    %v604 = vmul.f32 %v572, %v603
    %v605 = vsub.f32 1.0, %v604
    %v606 = vmul.f32 %v603, %v605
    %v607 = vadd.f32 %v603, %v606
    %vm608 = vweird.f32 %v572
    %vm609 = vweird.f32 %v603
    %vm610 = vmor %vm608, %vm609
    %v611 = vsel %vm610, %v603, %v607
    %v612 = vand.u32 2147483647, %v572
    %vm613 = vcmp.eq.f32.partialorder %v612, 8.507059e+37
    %v614 = vand.u32 %v572, 2147483648
    %v615 = vor.u32 1.1754944e-38, %v614
    %v616 = vsel %vm613, %v615, %v611
    %v617 = vmul.f32 1.0, %v616
    %v618 = vtanh.pop %v560
    %v619 = vmul.f32 %v587, %v470
    %v620 = vmul.f32 %v602, %v471
    %622 = vrot.lane.b32.xlu0 %v618, 96
    %v623 = vpop.permute.xlu0 %622
    %v625 = vmul.f32 %v587, %v623
    %627 = vrot.lane.b32.xlu0 %v625, 96
    %v628 = vpop.permute.xlu0 %627
    %v630 = vadd.f32 %v619, %v628
    %v631 = vadd.f32 %v620, %v628
    %v632 = vtanh.pop %v630
    %v633 = vtanh.pop %v631
    %636 = vrot.lane.b32.xlu0 %v632, 96
    %v637 = vpop.permute.xlu0 %636
    %638 = vrot.lane.b32.xlu0 %v633, 96
    %v639 = vpop.permute.xlu0 %638
    %v640 = vsel %vm330, %v637, %v639
    %v643 = vmul.f32 %v602, %v640
    %v644 = vmul.f32 %v617, %v639
    %v645 = vld [vmem:[#allocation2 + $0x30] sm:$0xff]
    %v646 = vld [vmem:[#allocation2 + $0x38] sm:$0xff]
    %v647 = vld [vmem:[#allocation2 + $0x40] sm:$0xff]
    %650 = vrot.lane.b32.xlu0 %v643, 64
    %v651 = vpop.permute.xlu0 %650
    %652 = vrot.lane.b32.xlu0 %v644, 64
    %v653 = vpop.permute.xlu0 %652
    %v654 = vsel %vm494, %v651, %v653
    %v655 = vsel %vm330, %v654, 0
    %657 = vmatpush.msra.mxu0 0.0
    %658 = vmatpush.msra.mxu0 0.0
    %659 = vmatpush.msra.mxu0 0.0
    %660 = vmatpush.msra.mxu0 0.0
    %661 = vmatpush.msra.mxu0 %v327
    %662 = vmatpush.msra.mxu0 %v324
    %663 = vmatpush.msra.mxu0 %v321
    %664 = vmatpush.msra.mxu0 %v318
    %665 = vmatpush.msra.mxu0 %v315
    %666 = vmatpush.msra.mxu0 %v312
    %667 = vmatpush.msra.mxu0 %v309
    %668 = vmatpush.msra.mxu0 %v306
    %669 = vmatpush.msra.mxu0 %v303
    %670 = vmatpush.msra.mxu0 %v300
    %671 = vmatpush.msra.mxu0 %v297
    %672 = vmatpush.msra.mxu0 %v294
    %673 = vmatmul.f32.gmra.mxu0 %v655
    %v674 = vpop.f32.mrf.mxu0
    %v675 = vadd.f32 0.0, %v674
    %676 = vdwg.mxu0
    %677 = vmatpush.msra.mxu0 0.0
    %678 = vmatpush.msra.mxu0 0.0
    %679 = vmatpush.msra.mxu0 0.0
    %680 = vmatpush.msra.mxu0 0.0
    %681 = vmatpush.msra.mxu0 %v328
    %682 = vmatpush.msra.mxu0 %v325
    %683 = vmatpush.msra.mxu0 %v322
    %684 = vmatpush.msra.mxu0 %v319
    %685 = vmatpush.msra.mxu0 %v316
    %686 = vmatpush.msra.mxu0 %v313
    %687 = vmatpush.msra.mxu0 %v310
    %688 = vmatpush.msra.mxu0 %v307
    %689 = vmatpush.msra.mxu0 %v304
    %690 = vmatpush.msra.mxu0 %v301
    %691 = vmatpush.msra.mxu0 %v298
    %692 = vmatpush.msra.mxu0 %v295
    %693 = vmatmul.f32.gmra.mxu0 %v655
    %v694 = vpop.f32.mrf.mxu0
    %v695 = vadd.f32 0.0, %v694
    %696 = vdwg.mxu0
    %697 = vmatpush.msra.mxu0 0.0
    %698 = vmatpush.msra.mxu0 0.0
    %699 = vmatpush.msra.mxu0 0.0
    %700 = vmatpush.msra.mxu0 0.0
    %701 = vmatpush.msra.mxu0 %v329
    %702 = vmatpush.msra.mxu0 %v326
    %703 = vmatpush.msra.mxu0 %v323
    %704 = vmatpush.msra.mxu0 %v320
    %705 = vmatpush.msra.mxu0 %v317
    %706 = vmatpush.msra.mxu0 %v314
    %707 = vmatpush.msra.mxu0 %v311
    %708 = vmatpush.msra.mxu0 %v308
    %709 = vmatpush.msra.mxu0 %v305
    %710 = vmatpush.msra.mxu0 %v302
    %711 = vmatpush.msra.mxu0 %v299
    %712 = vmatpush.msra.mxu0 %v296
    %713 = vmatmul.f32.gmra.mxu0 %v655
    %v714 = vpop.f32.mrf.mxu0
    %v715 = vadd.f32 0.0, %v714
    %716 = vdwg.mxu0
    %v717 = vadd.f32 %v645, %v675
    %v718 = vadd.f32 %v646, %v695
    %v719 = vadd.f32 %v647, %v715
    %v720 = vxor.u32 %v717, 2147483648
    %v721 = vxor.u32 %v718, 2147483648
    %v722 = vxor.u32 %v719, 2147483648
    %v723 = vmul.f32 %v720, 1.442695
    %v724 = vpow.pop %v723
    %v725 = vmul.f32 %v721, 1.442695
    %v726 = vpow.pop %v725
    %v727 = vmul.f32 %v722, 1.442695
    %v728 = vpow.pop %v727
    %v729 = vadd.f32 %v724, 1.0
    %v730 = vadd.f32 %v726, 1.0
    %v731 = vadd.f32 %v728, 1.0
    %v732 = vrcp.pop %v729
    %v733 = vmul.f32 %v729, %v732
    %v734 = vsub.f32 1.0, %v733
    %v735 = vmul.f32 %v732, %v734
    %v736 = vadd.f32 %v732, %v735
    %vm737 = vweird.f32 %v729
    %vm738 = vweird.f32 %v732
    %vm739 = vmor %vm737, %vm738
    %v740 = vsel %vm739, %v732, %v736
    %v741 = vand.u32 2147483647, %v729
    %vm742 = vcmp.eq.f32.partialorder %v741, 8.507059e+37
    %v743 = vand.u32 %v729, 2147483648
    %v744 = vor.u32 1.1754944e-38, %v743
    %v745 = vsel %vm742, %v744, %v740
    %v746 = vmul.f32 1.0, %v745
    %v747 = vrcp.pop %v730
    %v748 = vmul.f32 %v730, %v747
    %v749 = vsub.f32 1.0, %v748
    %v750 = vmul.f32 %v747, %v749
    %v751 = vadd.f32 %v747, %v750
    %vm752 = vweird.f32 %v730
    %vm753 = vweird.f32 %v747
    %vm754 = vmor %vm752, %vm753
    %v755 = vsel %vm754, %v747, %v751
    %v756 = vand.u32 2147483647, %v730
    %vm757 = vcmp.eq.f32.partialorder %v756, 8.507059e+37
    %v758 = vand.u32 %v730, 2147483648
    %v759 = vor.u32 1.1754944e-38, %v758
    %v760 = vsel %vm757, %v759, %v755
    %v761 = vmul.f32 1.0, %v760
    %v762 = vrcp.pop %v731
    %v763 = vmul.f32 %v731, %v762
    %v764 = vsub.f32 1.0, %v763
    %v765 = vmul.f32 %v762, %v764
    %v766 = vadd.f32 %v762, %v765
    %vm767 = vweird.f32 %v731
    %vm768 = vweird.f32 %v762
    %vm769 = vmor %vm767, %vm768
    %v770 = vsel %vm769, %v762, %v766
    %v771 = vand.u32 2147483647, %v731
    %vm772 = vcmp.eq.f32.partialorder %v771, 8.507059e+37
    %v773 = vand.u32 %v731, 2147483648
    %v774 = vor.u32 1.1754944e-38, %v773
    %v775 = vsel %vm772, %v774, %v770
    %v776 = vmul.f32 1.0, %v775
    %v777 = vtanh.pop %v719
    %v778 = vmul.f32 %v746, %v630
    %v779 = vmul.f32 %v761, %v631
    %781 = vrot.lane.b32.xlu0 %v777, 96
    %v782 = vpop.permute.xlu0 %781
    %v784 = vmul.f32 %v746, %v782
    %786 = vrot.lane.b32.xlu0 %v784, 96
    %v787 = vpop.permute.xlu0 %786
    %v789 = vadd.f32 %v778, %v787
    %v790 = vadd.f32 %v779, %v787
    %v791 = vtanh.pop %v789
    %v792 = vtanh.pop %v790
    %795 = vrot.lane.b32.xlu0 %v791, 96
    %v796 = vpop.permute.xlu0 %795
    %797 = vrot.lane.b32.xlu0 %v792, 96
    %v798 = vpop.permute.xlu0 %797
    %v799 = vsel %vm330, %v796, %v798
    %v802 = vmul.f32 %v761, %v799
    %v803 = vmul.f32 %v776, %v798
    %v804 = vld [vmem:[#allocation2 + $0x48] sm:$0xff]
    %v805 = vld [vmem:[#allocation2 + $0x50] sm:$0xff]
    %v806 = vld [vmem:[#allocation2 + $0x58] sm:$0xff]
    %809 = vrot.lane.b32.xlu0 %v802, 64
    %v810 = vpop.permute.xlu0 %809
    %811 = vrot.lane.b32.xlu0 %v803, 64
    %v812 = vpop.permute.xlu0 %811
    %v813 = vsel %vm494, %v810, %v812
    %v814 = vsel %vm330, %v813, 0
    %816 = vmatpush.msra.mxu0 0.0
    %817 = vmatpush.msra.mxu0 0.0
    %818 = vmatpush.msra.mxu0 0.0
    %819 = vmatpush.msra.mxu0 0.0
    %820 = vmatpush.msra.mxu0 %v327
    %821 = vmatpush.msra.mxu0 %v324
    %822 = vmatpush.msra.mxu0 %v321
    %823 = vmatpush.msra.mxu0 %v318
    %824 = vmatpush.msra.mxu0 %v315
    %825 = vmatpush.msra.mxu0 %v312
    %826 = vmatpush.msra.mxu0 %v309
    %827 = vmatpush.msra.mxu0 %v306
    %828 = vmatpush.msra.mxu0 %v303
    %829 = vmatpush.msra.mxu0 %v300
    %830 = vmatpush.msra.mxu0 %v297
    %831 = vmatpush.msra.mxu0 %v294
    %832 = vmatmul.f32.gmra.mxu0 %v814
    %v833 = vpop.f32.mrf.mxu0
    %v834 = vadd.f32 0.0, %v833
    %835 = vdwg.mxu0
    %836 = vmatpush.msra.mxu0 0.0
    %837 = vmatpush.msra.mxu0 0.0
    %838 = vmatpush.msra.mxu0 0.0
    %839 = vmatpush.msra.mxu0 0.0
    %840 = vmatpush.msra.mxu0 %v328
    %841 = vmatpush.msra.mxu0 %v325
    %842 = vmatpush.msra.mxu0 %v322
    %843 = vmatpush.msra.mxu0 %v319
    %844 = vmatpush.msra.mxu0 %v316
    %845 = vmatpush.msra.mxu0 %v313
    %846 = vmatpush.msra.mxu0 %v310
    %847 = vmatpush.msra.mxu0 %v307
    %848 = vmatpush.msra.mxu0 %v304
    %849 = vmatpush.msra.mxu0 %v301
    %850 = vmatpush.msra.mxu0 %v298
    %851 = vmatpush.msra.mxu0 %v295
    %852 = vmatmul.f32.gmra.mxu0 %v814
    %v853 = vpop.f32.mrf.mxu0
    %v854 = vadd.f32 0.0, %v853
    %855 = vdwg.mxu0
    %856 = vmatpush.msra.mxu0 0.0
    %857 = vmatpush.msra.mxu0 0.0
    %858 = vmatpush.msra.mxu0 0.0
    %859 = vmatpush.msra.mxu0 0.0
    %860 = vmatpush.msra.mxu0 %v329
    %861 = vmatpush.msra.mxu0 %v326
    %862 = vmatpush.msra.mxu0 %v323
    %863 = vmatpush.msra.mxu0 %v320
    %864 = vmatpush.msra.mxu0 %v317
    %865 = vmatpush.msra.mxu0 %v314
    %866 = vmatpush.msra.mxu0 %v311
    %867 = vmatpush.msra.mxu0 %v308
    %868 = vmatpush.msra.mxu0 %v305
    %869 = vmatpush.msra.mxu0 %v302
    %870 = vmatpush.msra.mxu0 %v299
    %871 = vmatpush.msra.mxu0 %v296
    %872 = vmatmul.f32.gmra.mxu0 %v814
    %v873 = vpop.f32.mrf.mxu0
    %v874 = vadd.f32 0.0, %v873
    %875 = vdwg.mxu0
    %v876 = vadd.f32 %v804, %v834
    %v877 = vadd.f32 %v805, %v854
    %v878 = vadd.f32 %v806, %v874
    %v879 = vxor.u32 %v876, 2147483648
    %v880 = vxor.u32 %v877, 2147483648
    %v881 = vxor.u32 %v878, 2147483648
    %v882 = vmul.f32 %v879, 1.442695
    %v883 = vpow.pop %v882
    %v884 = vmul.f32 %v880, 1.442695
    %v885 = vpow.pop %v884
    %v886 = vmul.f32 %v881, 1.442695
    %v887 = vpow.pop %v886
    %v888 = vadd.f32 %v883, 1.0
    %v889 = vadd.f32 %v885, 1.0
    %v890 = vadd.f32 %v887, 1.0
    %v891 = vrcp.pop %v888
    %v892 = vmul.f32 %v888, %v891
    %v893 = vsub.f32 1.0, %v892
    %v894 = vmul.f32 %v891, %v893
    %v895 = vadd.f32 %v891, %v894
    %vm896 = vweird.f32 %v888
    %vm897 = vweird.f32 %v891
    %vm898 = vmor %vm896, %vm897
    %v899 = vsel %vm898, %v891, %v895
    %v900 = vand.u32 2147483647, %v888
    %vm901 = vcmp.eq.f32.partialorder %v900, 8.507059e+37
    %v902 = vand.u32 %v888, 2147483648
    %v903 = vor.u32 1.1754944e-38, %v902
    %v904 = vsel %vm901, %v903, %v899
    %v905 = vmul.f32 1.0, %v904
    %v906 = vrcp.pop %v889
    %v907 = vmul.f32 %v889, %v906
    %v908 = vsub.f32 1.0, %v907
    %v909 = vmul.f32 %v906, %v908
    %v910 = vadd.f32 %v906, %v909
    %vm911 = vweird.f32 %v889
    %vm912 = vweird.f32 %v906
    %vm913 = vmor %vm911, %vm912
    %v914 = vsel %vm913, %v906, %v910
    %v915 = vand.u32 2147483647, %v889
    %vm916 = vcmp.eq.f32.partialorder %v915, 8.507059e+37
    %v917 = vand.u32 %v889, 2147483648
    %v918 = vor.u32 1.1754944e-38, %v917
    %v919 = vsel %vm916, %v918, %v914
    %v920 = vmul.f32 1.0, %v919
    %v921 = vrcp.pop %v890
    %v922 = vmul.f32 %v890, %v921
    %v923 = vsub.f32 1.0, %v922
    %v924 = vmul.f32 %v921, %v923
    %v925 = vadd.f32 %v921, %v924
    %vm926 = vweird.f32 %v890
    %vm927 = vweird.f32 %v921
    %vm928 = vmor %vm926, %vm927
    %v929 = vsel %vm928, %v921, %v925
    %v930 = vand.u32 2147483647, %v890
    %vm931 = vcmp.eq.f32.partialorder %v930, 8.507059e+37
    %v932 = vand.u32 %v890, 2147483648
    %v933 = vor.u32 1.1754944e-38, %v932
    %v934 = vsel %vm931, %v933, %v929
    %v935 = vmul.f32 1.0, %v934
    %v936 = vtanh.pop %v878
    %v937 = vmul.f32 %v905, %v789
    %v938 = vmul.f32 %v920, %v790
    %940 = vrot.lane.b32.xlu0 %v936, 96
    %v941 = vpop.permute.xlu0 %940
    %v943 = vmul.f32 %v905, %v941
    %945 = vrot.lane.b32.xlu0 %v943, 96
    %v946 = vpop.permute.xlu0 %945
    %v948 = vadd.f32 %v937, %v946
    %v949 = vadd.f32 %v938, %v946
    %v950 = vtanh.pop %v948
    %v951 = vtanh.pop %v949
    %954 = vrot.lane.b32.xlu0 %v950, 96
    %v955 = vpop.permute.xlu0 %954
    %956 = vrot.lane.b32.xlu0 %v951, 96
    %v957 = vpop.permute.xlu0 %956
    %v958 = vsel %vm330, %v955, %v957
    %v961 = vmul.f32 %v920, %v958
    %v962 = vmul.f32 %v935, %v957
    %v963 = vld [vmem:[#allocation2 + $0x60] sm:$0xff]
    %v964 = vld [vmem:[#allocation2 + $0x68] sm:$0xff]
    %v965 = vld [vmem:[#allocation2 + $0x70] sm:$0xff]
    %968 = vrot.lane.b32.xlu0 %v961, 64
    %v969 = vpop.permute.xlu0 %968
    %970 = vrot.lane.b32.xlu0 %v962, 64
    %v971 = vpop.permute.xlu0 %970
    %v972 = vsel %vm494, %v969, %v971
    %v973 = vsel %vm330, %v972, 0
    %975 = vmatpush.msra.mxu0 0.0
    %976 = vmatpush.msra.mxu0 0.0
    %977 = vmatpush.msra.mxu0 0.0
    %978 = vmatpush.msra.mxu0 0.0
    %979 = vmatpush.msra.mxu0 %v327
    %980 = vmatpush.msra.mxu0 %v324
    %981 = vmatpush.msra.mxu0 %v321
    %982 = vmatpush.msra.mxu0 %v318
    %983 = vmatpush.msra.mxu0 %v315
    %984 = vmatpush.msra.mxu0 %v312
    %985 = vmatpush.msra.mxu0 %v309
    %986 = vmatpush.msra.mxu0 %v306
    %987 = vmatpush.msra.mxu0 %v303
    %988 = vmatpush.msra.mxu0 %v300
    %989 = vmatpush.msra.mxu0 %v297
    %990 = vmatpush.msra.mxu0 %v294
    %991 = vmatmul.f32.gmra.mxu0 %v973
    %v992 = vpop.f32.mrf.mxu0
    %v993 = vadd.f32 0.0, %v992
    %994 = vdwg.mxu0
    %995 = vmatpush.msra.mxu0 0.0
    %996 = vmatpush.msra.mxu0 0.0
    %997 = vmatpush.msra.mxu0 0.0
    %998 = vmatpush.msra.mxu0 0.0
    %999 = vmatpush.msra.mxu0 %v328
    %1000 = vmatpush.msra.mxu0 %v325
    %1001 = vmatpush.msra.mxu0 %v322
    %1002 = vmatpush.msra.mxu0 %v319
    %1003 = vmatpush.msra.mxu0 %v316
    %1004 = vmatpush.msra.mxu0 %v313
    %1005 = vmatpush.msra.mxu0 %v310
    %1006 = vmatpush.msra.mxu0 %v307
    %1007 = vmatpush.msra.mxu0 %v304
    %1008 = vmatpush.msra.mxu0 %v301
    %1009 = vmatpush.msra.mxu0 %v298
    %1010 = vmatpush.msra.mxu0 %v295
    %1011 = vmatmul.f32.gmra.mxu0 %v973
    %v1012 = vpop.f32.mrf.mxu0
    %v1013 = vadd.f32 0.0, %v1012
    %1014 = vdwg.mxu0
    %1015 = vmatpush.msra.mxu0 0.0
    %1016 = vmatpush.msra.mxu0 0.0
    %1017 = vmatpush.msra.mxu0 0.0
    %1018 = vmatpush.msra.mxu0 0.0
    %1019 = vmatpush.msra.mxu0 %v329
    %1020 = vmatpush.msra.mxu0 %v326
    %1021 = vmatpush.msra.mxu0 %v323
    %1022 = vmatpush.msra.mxu0 %v320
    %1023 = vmatpush.msra.mxu0 %v317
    %1024 = vmatpush.msra.mxu0 %v314
    %1025 = vmatpush.msra.mxu0 %v311
    %1026 = vmatpush.msra.mxu0 %v308
    %1027 = vmatpush.msra.mxu0 %v305
    %1028 = vmatpush.msra.mxu0 %v302
    %1029 = vmatpush.msra.mxu0 %v299
    %1030 = vmatpush.msra.mxu0 %v296
    %1031 = vmatmul.f32.gmra.mxu0 %v973
    %v1032 = vpop.f32.mrf.mxu0
    %v1033 = vadd.f32 0.0, %v1032
    %1034 = vdwg.mxu0
    %v1035 = vadd.f32 %v963, %v993
    %v1036 = vadd.f32 %v964, %v1013
    %v1037 = vadd.f32 %v965, %v1033
    %v1038 = vxor.u32 %v1035, 2147483648
    %v1039 = vxor.u32 %v1036, 2147483648
    %v1040 = vxor.u32 %v1037, 2147483648
    %v1041 = vmul.f32 %v1038, 1.442695
    %v1042 = vpow.pop %v1041
    %v1043 = vmul.f32 %v1039, 1.442695
    %v1044 = vpow.pop %v1043
    %v1045 = vmul.f32 %v1040, 1.442695
    %v1046 = vpow.pop %v1045
    %v1047 = vadd.f32 %v1042, 1.0
    %v1048 = vadd.f32 %v1044, 1.0
    %v1049 = vadd.f32 %v1046, 1.0
    %v1050 = vrcp.pop %v1047
    %v1051 = vmul.f32 %v1047, %v1050
    %v1052 = vsub.f32 1.0, %v1051
    %v1053 = vmul.f32 %v1050, %v1052
    %v1054 = vadd.f32 %v1050, %v1053
    %vm1055 = vweird.f32 %v1047
    %vm1056 = vweird.f32 %v1050
    %vm1057 = vmor %vm1055, %vm1056
    %v1058 = vsel %vm1057, %v1050, %v1054
    %v1059 = vand.u32 2147483647, %v1047
    %vm1060 = vcmp.eq.f32.partialorder %v1059, 8.507059e+37
    %v1061 = vand.u32 %v1047, 2147483648
    %v1062 = vor.u32 1.1754944e-38, %v1061
    %v1063 = vsel %vm1060, %v1062, %v1058
    %v1064 = vmul.f32 1.0, %v1063
    %v1065 = vrcp.pop %v1048
    %v1066 = vmul.f32 %v1048, %v1065
    %v1067 = vsub.f32 1.0, %v1066
    %v1068 = vmul.f32 %v1065, %v1067
    %v1069 = vadd.f32 %v1065, %v1068
    %vm1070 = vweird.f32 %v1048
    %vm1071 = vweird.f32 %v1065
    %vm1072 = vmor %vm1070, %vm1071
    %v1073 = vsel %vm1072, %v1065, %v1069
    %v1074 = vand.u32 2147483647, %v1048
    %vm1075 = vcmp.eq.f32.partialorder %v1074, 8.507059e+37
    %v1076 = vand.u32 %v1048, 2147483648
    %v1077 = vor.u32 1.1754944e-38, %v1076
    %v1078 = vsel %vm1075, %v1077, %v1073
    %v1079 = vmul.f32 1.0, %v1078
    %v1080 = vrcp.pop %v1049
    %v1081 = vmul.f32 %v1049, %v1080
    %v1082 = vsub.f32 1.0, %v1081
    %v1083 = vmul.f32 %v1080, %v1082
    %v1084 = vadd.f32 %v1080, %v1083
    %vm1085 = vweird.f32 %v1049
    %vm1086 = vweird.f32 %v1080
    %vm1087 = vmor %vm1085, %vm1086
    %v1088 = vsel %vm1087, %v1080, %v1084
    %v1089 = vand.u32 2147483647, %v1049
    %vm1090 = vcmp.eq.f32.partialorder %v1089, 8.507059e+37
    %v1091 = vand.u32 %v1049, 2147483648
    %v1092 = vor.u32 1.1754944e-38, %v1091
    %v1093 = vsel %vm1090, %v1092, %v1088
    %v1094 = vmul.f32 1.0, %v1093
    %v1095 = vtanh.pop %v1037
    %v1096 = vmul.f32 %v1064, %v948
    %v1097 = vmul.f32 %v1079, %v949
    %1099 = vrot.lane.b32.xlu0 %v1095, 96
    %v1100 = vpop.permute.xlu0 %1099
    %v1102 = vmul.f32 %v1064, %v1100
    %1104 = vrot.lane.b32.xlu0 %v1102, 96
    %v1105 = vpop.permute.xlu0 %1104
    %v1107 = vadd.f32 %v1096, %v1105
    %v1108 = vadd.f32 %v1097, %v1105
    %v1109 = vtanh.pop %v1107
    %v1110 = vtanh.pop %v1108
    %1113 = vrot.lane.b32.xlu0 %v1109, 96
    %v1114 = vpop.permute.xlu0 %1113
    %1115 = vrot.lane.b32.xlu0 %v1110, 96
    %v1116 = vpop.permute.xlu0 %1115
    %v1117 = vsel %vm330, %v1114, %v1116
    %v1120 = vmul.f32 %v1079, %v1117
    %v1121 = vmul.f32 %v1094, %v1116
    %v1122 = vld [vmem:[#allocation2 + $0x78] sm:$0xff]
    %v1123 = vld [vmem:[#allocation2 + $0x80] sm:$0xff]
    %v1124 = vld [vmem:[#allocation2 + $0x88] sm:$0xff]
    %1127 = vrot.lane.b32.xlu0 %v1120, 64
    %v1128 = vpop.permute.xlu0 %1127
    %1129 = vrot.lane.b32.xlu0 %v1121, 64
    %v1130 = vpop.permute.xlu0 %1129
    %v1131 = vsel %vm494, %v1128, %v1130
    %v1132 = vsel %vm330, %v1131, 0
    %1134 = vmatpush.msra.mxu0 0.0
    %1135 = vmatpush.msra.mxu0 0.0
    %1136 = vmatpush.msra.mxu0 0.0
    %1137 = vmatpush.msra.mxu0 0.0
    %1138 = vmatpush.msra.mxu0 %v327
    %1139 = vmatpush.msra.mxu0 %v324
    %1140 = vmatpush.msra.mxu0 %v321
    %1141 = vmatpush.msra.mxu0 %v318
    %1142 = vmatpush.msra.mxu0 %v315
    %1143 = vmatpush.msra.mxu0 %v312
    %1144 = vmatpush.msra.mxu0 %v309
    %1145 = vmatpush.msra.mxu0 %v306
    %1146 = vmatpush.msra.mxu0 %v303
    %1147 = vmatpush.msra.mxu0 %v300
    %1148 = vmatpush.msra.mxu0 %v297
    %1149 = vmatpush.msra.mxu0 %v294
    %1150 = vmatmul.f32.gmra.mxu0 %v1132
    %v1151 = vpop.f32.mrf.mxu0
    %v1152 = vadd.f32 0.0, %v1151
    %1153 = vdwg.mxu0
    %1154 = vmatpush.msra.mxu0 0.0
    %1155 = vmatpush.msra.mxu0 0.0
    %1156 = vmatpush.msra.mxu0 0.0
    %1157 = vmatpush.msra.mxu0 0.0
    %1158 = vmatpush.msra.mxu0 %v328
    %1159 = vmatpush.msra.mxu0 %v325
    %1160 = vmatpush.msra.mxu0 %v322
    %1161 = vmatpush.msra.mxu0 %v319
    %1162 = vmatpush.msra.mxu0 %v316
    %1163 = vmatpush.msra.mxu0 %v313
    %1164 = vmatpush.msra.mxu0 %v310
    %1165 = vmatpush.msra.mxu0 %v307
    %1166 = vmatpush.msra.mxu0 %v304
    %1167 = vmatpush.msra.mxu0 %v301
    %1168 = vmatpush.msra.mxu0 %v298
    %1169 = vmatpush.msra.mxu0 %v295
    %1170 = vmatmul.f32.gmra.mxu0 %v1132
    %v1171 = vpop.f32.mrf.mxu0
    %v1172 = vadd.f32 0.0, %v1171
    %1173 = vdwg.mxu0
    %1174 = vmatpush.msra.mxu0 0.0
    %1175 = vmatpush.msra.mxu0 0.0
    %1176 = vmatpush.msra.mxu0 0.0
    %1177 = vmatpush.msra.mxu0 0.0
    %1178 = vmatpush.msra.mxu0 %v329
    %1179 = vmatpush.msra.mxu0 %v326
    %1180 = vmatpush.msra.mxu0 %v323
    %1181 = vmatpush.msra.mxu0 %v320
    %1182 = vmatpush.msra.mxu0 %v317
    %1183 = vmatpush.msra.mxu0 %v314
    %1184 = vmatpush.msra.mxu0 %v311
    %1185 = vmatpush.msra.mxu0 %v308
    %1186 = vmatpush.msra.mxu0 %v305
    %1187 = vmatpush.msra.mxu0 %v302
    %1188 = vmatpush.msra.mxu0 %v299
    %1189 = vmatpush.msra.mxu0 %v296
    %1190 = vmatmul.f32.gmra.mxu0 %v1132
    %v1191 = vpop.f32.mrf.mxu0
    %v1192 = vadd.f32 0.0, %v1191
    %1193 = vdwg.mxu0
    %v1194 = vadd.f32 %v1122, %v1152
    %v1195 = vadd.f32 %v1123, %v1172
    %v1196 = vadd.f32 %v1124, %v1192
    %v1197 = vxor.u32 %v1194, 2147483648
    %v1198 = vxor.u32 %v1195, 2147483648
    %v1199 = vxor.u32 %v1196, 2147483648
    %v1200 = vmul.f32 %v1197, 1.442695
    %v1201 = vpow.pop %v1200
    %v1202 = vmul.f32 %v1198, 1.442695
    %v1203 = vpow.pop %v1202
    %v1204 = vmul.f32 %v1199, 1.442695
    %v1205 = vpow.pop %v1204
    %v1206 = vadd.f32 %v1201, 1.0
    %v1207 = vadd.f32 %v1203, 1.0
    %v1208 = vadd.f32 %v1205, 1.0
    %v1209 = vrcp.pop %v1206
    %v1210 = vmul.f32 %v1206, %v1209
    %v1211 = vsub.f32 1.0, %v1210
    %v1212 = vmul.f32 %v1209, %v1211
    %v1213 = vadd.f32 %v1209, %v1212
    %vm1214 = vweird.f32 %v1206
    %vm1215 = vweird.f32 %v1209
    %vm1216 = vmor %vm1214, %vm1215
    %v1217 = vsel %vm1216, %v1209, %v1213
    %v1218 = vand.u32 2147483647, %v1206
    %vm1219 = vcmp.eq.f32.partialorder %v1218, 8.507059e+37
    %v1220 = vand.u32 %v1206, 2147483648
    %v1221 = vor.u32 1.1754944e-38, %v1220
    %v1222 = vsel %vm1219, %v1221, %v1217
    %v1223 = vmul.f32 1.0, %v1222
    %v1224 = vrcp.pop %v1207
    %v1225 = vmul.f32 %v1207, %v1224
    %v1226 = vsub.f32 1.0, %v1225
    %v1227 = vmul.f32 %v1224, %v1226
    %v1228 = vadd.f32 %v1224, %v1227
    %vm1229 = vweird.f32 %v1207
    %vm1230 = vweird.f32 %v1224
    %vm1231 = vmor %vm1229, %vm1230
    %v1232 = vsel %vm1231, %v1224, %v1228
    %v1233 = vand.u32 2147483647, %v1207
    %vm1234 = vcmp.eq.f32.partialorder %v1233, 8.507059e+37
    %v1235 = vand.u32 %v1207, 2147483648
    %v1236 = vor.u32 1.1754944e-38, %v1235
    %v1237 = vsel %vm1234, %v1236, %v1232
    %v1238 = vmul.f32 1.0, %v1237
    %v1239 = vrcp.pop %v1208
    %v1240 = vmul.f32 %v1208, %v1239
    %v1241 = vsub.f32 1.0, %v1240
    %v1242 = vmul.f32 %v1239, %v1241
    %v1243 = vadd.f32 %v1239, %v1242
    %vm1244 = vweird.f32 %v1208
    %vm1245 = vweird.f32 %v1239
    %vm1246 = vmor %vm1244, %vm1245
    %v1247 = vsel %vm1246, %v1239, %v1243
    %v1248 = vand.u32 2147483647, %v1208
    %vm1249 = vcmp.eq.f32.partialorder %v1248, 8.507059e+37
    %v1250 = vand.u32 %v1208, 2147483648
    %v1251 = vor.u32 1.1754944e-38, %v1250
    %v1252 = vsel %vm1249, %v1251, %v1247
    %v1253 = vmul.f32 1.0, %v1252
    %v1254 = vtanh.pop %v1196
    %v1255 = vmul.f32 %v1223, %v1107
    %v1256 = vmul.f32 %v1238, %v1108
    %1258 = vrot.lane.b32.xlu0 %v1254, 96
    %v1259 = vpop.permute.xlu0 %1258
    %v1261 = vmul.f32 %v1223, %v1259
    %1263 = vrot.lane.b32.xlu0 %v1261, 96
    %v1264 = vpop.permute.xlu0 %1263
    %v1266 = vadd.f32 %v1255, %v1264
    %v1267 = vadd.f32 %v1256, %v1264
    %v1268 = vtanh.pop %v1266
    %v1269 = vtanh.pop %v1267
    %1272 = vrot.lane.b32.xlu0 %v1268, 96
    %v1273 = vpop.permute.xlu0 %1272
    %1274 = vrot.lane.b32.xlu0 %v1269, 96
    %v1275 = vpop.permute.xlu0 %1274
    %v1276 = vsel %vm330, %v1273, %v1275
    %v1279 = vmul.f32 %v1238, %v1276
    %v1280 = vmul.f32 %v1253, %v1275
    %v1281 = vld [vmem:[#allocation2 + $0x90] sm:$0xff]
    %v1282 = vld [vmem:[#allocation2 + $0x98] sm:$0xff]
    %v1283 = vld [vmem:[#allocation2 + $0xa0] sm:$0xff]
    %1286 = vrot.lane.b32.xlu0 %v1279, 64
    %v1287 = vpop.permute.xlu0 %1286
    %1288 = vrot.lane.b32.xlu0 %v1280, 64
    %v1289 = vpop.permute.xlu0 %1288
    %v1290 = vsel %vm494, %v1287, %v1289
    %v1291 = vsel %vm330, %v1290, 0
    %1293 = vmatpush.msra.mxu0 0.0
    %1294 = vmatpush.msra.mxu0 0.0
    %1295 = vmatpush.msra.mxu0 0.0
    %1296 = vmatpush.msra.mxu0 0.0
    %1297 = vmatpush.msra.mxu0 %v327
    %1298 = vmatpush.msra.mxu0 %v324
    %1299 = vmatpush.msra.mxu0 %v321
    %1300 = vmatpush.msra.mxu0 %v318
    %1301 = vmatpush.msra.mxu0 %v315
    %1302 = vmatpush.msra.mxu0 %v312
    %1303 = vmatpush.msra.mxu0 %v309
    %1304 = vmatpush.msra.mxu0 %v306
    %1305 = vmatpush.msra.mxu0 %v303
    %1306 = vmatpush.msra.mxu0 %v300
    %1307 = vmatpush.msra.mxu0 %v297
    %1308 = vmatpush.msra.mxu0 %v294
    %1309 = vmatmul.f32.gmra.mxu0 %v1291
    %v1310 = vpop.f32.mrf.mxu0
    %v1311 = vadd.f32 0.0, %v1310
    %1312 = vdwg.mxu0
    %1313 = vmatpush.msra.mxu0 0.0
    %1314 = vmatpush.msra.mxu0 0.0
    %1315 = vmatpush.msra.mxu0 0.0
    %1316 = vmatpush.msra.mxu0 0.0
    %1317 = vmatpush.msra.mxu0 %v328
    %1318 = vmatpush.msra.mxu0 %v325
    %1319 = vmatpush.msra.mxu0 %v322
    %1320 = vmatpush.msra.mxu0 %v319
    %1321 = vmatpush.msra.mxu0 %v316
    %1322 = vmatpush.msra.mxu0 %v313
    %1323 = vmatpush.msra.mxu0 %v310
    %1324 = vmatpush.msra.mxu0 %v307
    %1325 = vmatpush.msra.mxu0 %v304
    %1326 = vmatpush.msra.mxu0 %v301
    %1327 = vmatpush.msra.mxu0 %v298
    %1328 = vmatpush.msra.mxu0 %v295
    %1329 = vmatmul.f32.gmra.mxu0 %v1291
    %v1330 = vpop.f32.mrf.mxu0
    %v1331 = vadd.f32 0.0, %v1330
    %1332 = vdwg.mxu0
    %1333 = vmatpush.msra.mxu0 0.0
    %1334 = vmatpush.msra.mxu0 0.0
    %1335 = vmatpush.msra.mxu0 0.0
    %1336 = vmatpush.msra.mxu0 0.0
    %1337 = vmatpush.msra.mxu0 %v329
    %1338 = vmatpush.msra.mxu0 %v326
    %1339 = vmatpush.msra.mxu0 %v323
    %1340 = vmatpush.msra.mxu0 %v320
    %1341 = vmatpush.msra.mxu0 %v317
    %1342 = vmatpush.msra.mxu0 %v314
    %1343 = vmatpush.msra.mxu0 %v311
    %1344 = vmatpush.msra.mxu0 %v308
    %1345 = vmatpush.msra.mxu0 %v305
    %1346 = vmatpush.msra.mxu0 %v302
    %1347 = vmatpush.msra.mxu0 %v299
    %1348 = vmatpush.msra.mxu0 %v296
    %1349 = vmatmul.f32.gmra.mxu0 %v1291
    %v1350 = vpop.f32.mrf.mxu0
    %v1351 = vadd.f32 0.0, %v1350
    %1352 = vdwg.mxu0
    %v1353 = vadd.f32 %v1281, %v1311
    %v1354 = vadd.f32 %v1282, %v1331
    %v1355 = vadd.f32 %v1283, %v1351
    %v1356 = vxor.u32 %v1353, 2147483648
    %v1357 = vxor.u32 %v1354, 2147483648
    %v1358 = vxor.u32 %v1355, 2147483648
    %v1359 = vmul.f32 %v1356, 1.442695
    %v1360 = vpow.pop %v1359
    %v1361 = vmul.f32 %v1357, 1.442695
    %v1362 = vpow.pop %v1361
    %v1363 = vmul.f32 %v1358, 1.442695
    %v1364 = vpow.pop %v1363
    %v1365 = vadd.f32 %v1360, 1.0
    %v1366 = vadd.f32 %v1362, 1.0
    %v1367 = vadd.f32 %v1364, 1.0
    %v1368 = vrcp.pop %v1365
    %v1369 = vmul.f32 %v1365, %v1368
    %v1370 = vsub.f32 1.0, %v1369
    %v1371 = vmul.f32 %v1368, %v1370
    %v1372 = vadd.f32 %v1368, %v1371
    %vm1373 = vweird.f32 %v1365
    %vm1374 = vweird.f32 %v1368
    %vm1375 = vmor %vm1373, %vm1374
    %v1376 = vsel %vm1375, %v1368, %v1372
    %v1377 = vand.u32 2147483647, %v1365
    %vm1378 = vcmp.eq.f32.partialorder %v1377, 8.507059e+37
    %v1379 = vand.u32 %v1365, 2147483648
    %v1380 = vor.u32 1.1754944e-38, %v1379
    %v1381 = vsel %vm1378, %v1380, %v1376
    %v1382 = vmul.f32 1.0, %v1381
    %v1383 = vrcp.pop %v1366
    %v1384 = vmul.f32 %v1366, %v1383
    %v1385 = vsub.f32 1.0, %v1384
    %v1386 = vmul.f32 %v1383, %v1385
    %v1387 = vadd.f32 %v1383, %v1386
    %vm1388 = vweird.f32 %v1366
    %vm1389 = vweird.f32 %v1383
    %vm1390 = vmor %vm1388, %vm1389
    %v1391 = vsel %vm1390, %v1383, %v1387
    %v1392 = vand.u32 2147483647, %v1366
    %vm1393 = vcmp.eq.f32.partialorder %v1392, 8.507059e+37
    %v1394 = vand.u32 %v1366, 2147483648
    %v1395 = vor.u32 1.1754944e-38, %v1394
    %v1396 = vsel %vm1393, %v1395, %v1391
    %v1397 = vmul.f32 1.0, %v1396
    %v1398 = vrcp.pop %v1367
    %v1399 = vmul.f32 %v1367, %v1398
    %v1400 = vsub.f32 1.0, %v1399
    %v1401 = vmul.f32 %v1398, %v1400
    %v1402 = vadd.f32 %v1398, %v1401
    %vm1403 = vweird.f32 %v1367
    %vm1404 = vweird.f32 %v1398
    %vm1405 = vmor %vm1403, %vm1404
    %v1406 = vsel %vm1405, %v1398, %v1402
    %v1407 = vand.u32 2147483647, %v1367
    %vm1408 = vcmp.eq.f32.partialorder %v1407, 8.507059e+37
    %v1409 = vand.u32 %v1367, 2147483648
    %v1410 = vor.u32 1.1754944e-38, %v1409
    %v1411 = vsel %vm1408, %v1410, %v1406
    %v1412 = vmul.f32 1.0, %v1411
    %v1413 = vtanh.pop %v1355
    %v1414 = vmul.f32 %v1382, %v1266
    %v1415 = vmul.f32 %v1397, %v1267
    %1417 = vrot.lane.b32.xlu0 %v1413, 96
    %v1418 = vpop.permute.xlu0 %1417
    %v1420 = vmul.f32 %v1382, %v1418
    %1422 = vrot.lane.b32.xlu0 %v1420, 96
    %v1423 = vpop.permute.xlu0 %1422
    %v1425 = vadd.f32 %v1414, %v1423
    %v1426 = vadd.f32 %v1415, %v1423
    %v1427 = vtanh.pop %v1425
    %v1428 = vtanh.pop %v1426
    %1431 = vrot.lane.b32.xlu0 %v1427, 96
    %v1432 = vpop.permute.xlu0 %1431
    %1433 = vrot.lane.b32.xlu0 %v1428, 96
    %v1434 = vpop.permute.xlu0 %1433
    %v1435 = vsel %vm330, %v1432, %v1434
    %v1438 = vmul.f32 %v1397, %v1435
    %v1439 = vmul.f32 %v1412, %v1434
    %v1440 = vld [vmem:[#allocation2 + $0xa8] sm:$0xff]
    %v1441 = vld [vmem:[#allocation2 + $0xb0] sm:$0xff]
    %v1442 = vld [vmem:[#allocation2 + $0xb8] sm:$0xff]
    %1445 = vrot.lane.b32.xlu0 %v1438, 64
    %v1446 = vpop.permute.xlu0 %1445
    %1447 = vrot.lane.b32.xlu0 %v1439, 64
    %v1448 = vpop.permute.xlu0 %1447
    %v1449 = vsel %vm494, %v1446, %v1448
    %v1450 = vsel %vm330, %v1449, 0
    %1452 = vmatpush.msra.mxu0 0.0
    %1453 = vmatpush.msra.mxu0 0.0
    %1454 = vmatpush.msra.mxu0 0.0
    %1455 = vmatpush.msra.mxu0 0.0
    %1456 = vmatpush.msra.mxu0 %v327
    %1457 = vmatpush.msra.mxu0 %v324
    %1458 = vmatpush.msra.mxu0 %v321
    %1459 = vmatpush.msra.mxu0 %v318
    %1460 = vmatpush.msra.mxu0 %v315
    %1461 = vmatpush.msra.mxu0 %v312
    %1462 = vmatpush.msra.mxu0 %v309
    %1463 = vmatpush.msra.mxu0 %v306
    %1464 = vmatpush.msra.mxu0 %v303
    %1465 = vmatpush.msra.mxu0 %v300
    %1466 = vmatpush.msra.mxu0 %v297
    %1467 = vmatpush.msra.mxu0 %v294
    %1468 = vmatmul.f32.gmra.mxu0 %v1450
    %v1469 = vpop.f32.mrf.mxu0
    %v1470 = vadd.f32 0.0, %v1469
    %1471 = vdwg.mxu0
    %1472 = vmatpush.msra.mxu0 0.0
    %1473 = vmatpush.msra.mxu0 0.0
    %1474 = vmatpush.msra.mxu0 0.0
    %1475 = vmatpush.msra.mxu0 0.0
    %1476 = vmatpush.msra.mxu0 %v328
    %1477 = vmatpush.msra.mxu0 %v325
    %1478 = vmatpush.msra.mxu0 %v322
    %1479 = vmatpush.msra.mxu0 %v319
    %1480 = vmatpush.msra.mxu0 %v316
    %1481 = vmatpush.msra.mxu0 %v313
    %1482 = vmatpush.msra.mxu0 %v310
    %1483 = vmatpush.msra.mxu0 %v307
    %1484 = vmatpush.msra.mxu0 %v304
    %1485 = vmatpush.msra.mxu0 %v301
    %1486 = vmatpush.msra.mxu0 %v298
    %1487 = vmatpush.msra.mxu0 %v295
    %1488 = vmatmul.f32.gmra.mxu0 %v1450
    %v1489 = vpop.f32.mrf.mxu0
    %v1490 = vadd.f32 0.0, %v1489
    %1491 = vdwg.mxu0
    %1492 = vmatpush.msra.mxu0 0.0
    %1493 = vmatpush.msra.mxu0 0.0
    %1494 = vmatpush.msra.mxu0 0.0
    %1495 = vmatpush.msra.mxu0 0.0
    %1496 = vmatpush.msra.mxu0 %v329
    %1497 = vmatpush.msra.mxu0 %v326
    %1498 = vmatpush.msra.mxu0 %v323
    %1499 = vmatpush.msra.mxu0 %v320
    %1500 = vmatpush.msra.mxu0 %v317
    %1501 = vmatpush.msra.mxu0 %v314
    %1502 = vmatpush.msra.mxu0 %v311
    %1503 = vmatpush.msra.mxu0 %v308
    %1504 = vmatpush.msra.mxu0 %v305
    %1505 = vmatpush.msra.mxu0 %v302
    %1506 = vmatpush.msra.mxu0 %v299
    %1507 = vmatpush.msra.mxu0 %v296
    %1508 = vmatmul.f32.gmra.mxu0 %v1450
    %v1509 = vpop.f32.mrf.mxu0
    %v1510 = vadd.f32 0.0, %v1509
    %1511 = vdwg.mxu0
    %v1512 = vadd.f32 %v1440, %v1470
    %v1513 = vadd.f32 %v1441, %v1490
    %v1514 = vadd.f32 %v1442, %v1510
    %v1515 = vxor.u32 %v1512, 2147483648
    %v1516 = vxor.u32 %v1513, 2147483648
    %v1517 = vxor.u32 %v1514, 2147483648
    %v1518 = vmul.f32 %v1515, 1.442695
    %v1519 = vpow.pop %v1518
    %v1520 = vmul.f32 %v1516, 1.442695
    %v1521 = vpow.pop %v1520
    %v1522 = vmul.f32 %v1517, 1.442695
    %v1523 = vpow.pop %v1522
    %v1524 = vadd.f32 %v1519, 1.0
    %v1525 = vadd.f32 %v1521, 1.0
    %v1526 = vadd.f32 %v1523, 1.0
    %v1527 = vrcp.pop %v1524
    %v1528 = vmul.f32 %v1524, %v1527
    %v1529 = vsub.f32 1.0, %v1528
    %v1530 = vmul.f32 %v1527, %v1529
    %v1531 = vadd.f32 %v1527, %v1530
    %vm1532 = vweird.f32 %v1524
    %vm1533 = vweird.f32 %v1527
    %vm1534 = vmor %vm1532, %vm1533
    %v1535 = vsel %vm1534, %v1527, %v1531
    %v1536 = vand.u32 2147483647, %v1524
    %vm1537 = vcmp.eq.f32.partialorder %v1536, 8.507059e+37
    %v1538 = vand.u32 %v1524, 2147483648
    %v1539 = vor.u32 1.1754944e-38, %v1538
    %v1540 = vsel %vm1537, %v1539, %v1535
    %v1541 = vmul.f32 1.0, %v1540
    %v1542 = vrcp.pop %v1525
    %v1543 = vmul.f32 %v1525, %v1542
    %v1544 = vsub.f32 1.0, %v1543
    %v1545 = vmul.f32 %v1542, %v1544
    %v1546 = vadd.f32 %v1542, %v1545
    %vm1547 = vweird.f32 %v1525
    %vm1548 = vweird.f32 %v1542
    %vm1549 = vmor %vm1547, %vm1548
    %v1550 = vsel %vm1549, %v1542, %v1546
    %v1551 = vand.u32 2147483647, %v1525
    %vm1552 = vcmp.eq.f32.partialorder %v1551, 8.507059e+37
    %v1553 = vand.u32 %v1525, 2147483648
    %v1554 = vor.u32 1.1754944e-38, %v1553
    %v1555 = vsel %vm1552, %v1554, %v1550
    %v1556 = vmul.f32 1.0, %v1555
    %v1557 = vrcp.pop %v1526
    %v1558 = vmul.f32 %v1526, %v1557
    %v1559 = vsub.f32 1.0, %v1558
    %v1560 = vmul.f32 %v1557, %v1559
    %v1561 = vadd.f32 %v1557, %v1560
    %vm1562 = vweird.f32 %v1526
    %vm1563 = vweird.f32 %v1557
    %vm1564 = vmor %vm1562, %vm1563
    %v1565 = vsel %vm1564, %v1557, %v1561
    %v1566 = vand.u32 2147483647, %v1526
    %vm1567 = vcmp.eq.f32.partialorder %v1566, 8.507059e+37
    %v1568 = vand.u32 %v1526, 2147483648
    %v1569 = vor.u32 1.1754944e-38, %v1568
    %v1570 = vsel %vm1567, %v1569, %v1565
    %v1571 = vmul.f32 1.0, %v1570
    %v1572 = vtanh.pop %v1514
    %v1573 = vmul.f32 %v1541, %v1425
    %v1574 = vmul.f32 %v1556, %v1426
    %1576 = vrot.lane.b32.xlu0 %v1572, 96
    %v1577 = vpop.permute.xlu0 %1576
    %v1579 = vmul.f32 %v1541, %v1577
    %1581 = vrot.lane.b32.xlu0 %v1579, 96
    %v1582 = vpop.permute.xlu0 %1581
    %v1584 = vadd.f32 %v1573, %v1582
    %v1585 = vadd.f32 %v1574, %v1582
    %v1586 = vtanh.pop %v1584
    %v1587 = vtanh.pop %v1585
    %1590 = vrot.lane.b32.xlu0 %v1586, 96
    %v1591 = vpop.permute.xlu0 %1590
    %1592 = vrot.lane.b32.xlu0 %v1587, 96
    %v1593 = vpop.permute.xlu0 %1592
    %v1594 = vsel %vm330, %v1591, %v1593
    %v1597 = vmul.f32 %v1556, %v1594
    %v1598 = vmul.f32 %v1571, %v1593
    %1601 = vrot.lane.b32.xlu0 %v1597, 64
    %v1602 = vpop.permute.xlu0 %1601
    %1603 = vrot.lane.b32.xlu0 %v1598, 64
    %v1604 = vpop.permute.xlu0 %1603
    %v1605 = vsel %vm494, %v1602, %v1604
    %1607 = vst.msk [vmem:[#allocation11] sm:$0xff] %vm330, %v1605
    %1610 = vrot.lane.b32.xlu0 %v1584, 32
    %v1611 = vpop.permute.xlu0 %1610
    %1612 = vrot.lane.b32.xlu0 %v1585, 32
    %v1613 = vpop.permute.xlu0 %1612
    %vm1614 = vcmask 261120
    %v1615 = vsel %vm1614, %v1611, %v1613
    %1617 = vst.msk [vmem:[#allocation13] sm:$0xff] %vm330, %v1615
    %v1618 = vld [vmem:[#allocation7] sm:$0xff]
    %v1619 = vld [vmem:[#allocation7 + $0x8] sm:$0xff]
    %v1620 = vld [vmem:[#allocation7 + $0x10] sm:$0xff]
    %v1621 = vld [vmem:[#allocation7 + $0x18] sm:$0xff]
    %v1622 = vld [vmem:[#allocation7 + $0x20] sm:$0xff]
    %v1623 = vld [vmem:[#allocation7 + $0x28] sm:$0xff]
    %v1624 = vld [vmem:[#allocation7 + $0x30] sm:$0xff]
    %v1625 = vld [vmem:[#allocation7 + $0x38] sm:$0xff]
    %v1626 = vld [vmem:[#allocation7 + $0x40] sm:$0xff]
    %v1627 = vld [vmem:[#allocation7 + $0x48] sm:$0xff]
    %v1628 = vld [vmem:[#allocation7 + $0x50] sm:$0xff]
    %v1629 = vld [vmem:[#allocation7 + $0x58] sm:$0xff]
    %v1630 = vld [vmem:[#allocation7 + $0x60] sm:$0xff]
    %v1631 = vld [vmem:[#allocation7 + $0x68] sm:$0xff]
    %v1632 = vld [vmem:[#allocation7 + $0x70] sm:$0xff]
    %v1633 = vld [vmem:[#allocation7 + $0x78] sm:$0xff]
    %v1634 = vld [vmem:[#allocation7 + $0x80] sm:$0xff]
    %v1635 = vld [vmem:[#allocation7 + $0x88] sm:$0xff]
    %v1636 = vld [vmem:[#allocation7 + $0x90] sm:$0xff]
    %v1637 = vld [vmem:[#allocation7 + $0x98] sm:$0xff]
    %v1638 = vld [vmem:[#allocation7 + $0xa0] sm:$0xff]
    %v1639 = vld [vmem:[#allocation7 + $0xa8] sm:$0xff]
    %v1640 = vld [vmem:[#allocation7 + $0xb0] sm:$0xff]
    %v1641 = vld [vmem:[#allocation7 + $0xb8] sm:$0xff]
    %v1642 = vld [vmem:[%s7] sm:$0x3]
    %v1644 = vperm.slane %v1642, 0
    %v1645 = vperm.slane %v1642, 1
    %v1648 = vsel %vm330, %v1605, 0
    %1650 = vmatpush.msra.mxu0 0.0
    %1651 = vmatpush.msra.mxu0 0.0
    %1652 = vmatpush.msra.mxu0 0.0
    %1653 = vmatpush.msra.mxu0 0.0
    %1654 = vmatpush.msra.mxu0 %v1640
    %1655 = vmatpush.msra.mxu0 %v1638
    %1656 = vmatpush.msra.mxu0 %v1636
    %1657 = vmatpush.msra.mxu0 %v1634
    %1658 = vmatpush.msra.mxu0 %v1632
    %1659 = vmatpush.msra.mxu0 %v1630
    %1660 = vmatpush.msra.mxu0 %v1628
    %1661 = vmatpush.msra.mxu0 %v1626
    %1662 = vmatpush.msra.mxu0 %v1624
    %1663 = vmatpush.msra.mxu0 %v1622
    %1664 = vmatpush.msra.mxu0 %v1620
    %1665 = vmatpush.msra.mxu0 %v1618
    %1666 = vmatmul.f32.gmra.mxu0 %v496
    %v1667 = vpop.f32.mrf.mxu0
    %v1668 = vadd.f32 %v1644, %v1667
    %1669 = vmatmul.f32.gmra.mxu0 %v655
    %v1670 = vpop.f32.mrf.mxu0
    %v1671 = vadd.f32 %v1644, %v1670
    %1672 = vmatmul.f32.gmra.mxu0 %v814
    %v1673 = vpop.f32.mrf.mxu0
    %v1674 = vadd.f32 %v1644, %v1673
    %1675 = vmatmul.f32.gmra.mxu0 %v973
    %v1676 = vpop.f32.mrf.mxu0
    %v1677 = vadd.f32 %v1644, %v1676
    %1678 = vmatmul.f32.gmra.mxu0 %v1132
    %v1679 = vpop.f32.mrf.mxu0
    %v1680 = vadd.f32 %v1644, %v1679
    %1681 = vmatmul.f32.gmra.mxu0 %v1291
    %v1682 = vpop.f32.mrf.mxu0
    %v1683 = vadd.f32 %v1644, %v1682
    %1684 = vmatmul.f32.gmra.mxu0 %v1450
    %v1685 = vpop.f32.mrf.mxu0
    %v1686 = vadd.f32 %v1644, %v1685
    %1687 = vmatmul.f32.gmra.mxu0 %v1648
    %v1688 = vpop.f32.mrf.mxu0
    %v1689 = vadd.f32 %v1644, %v1688
    %1690 = vdwg.mxu0
    %1691 = vmatpush.msra.mxu0 0.0
    %1692 = vmatpush.msra.mxu0 0.0
    %1693 = vmatpush.msra.mxu0 0.0
    %1694 = vmatpush.msra.mxu0 0.0
    %1695 = vmatpush.msra.mxu0 %v1641
    %1696 = vmatpush.msra.mxu0 %v1639
    %1697 = vmatpush.msra.mxu0 %v1637
    %1698 = vmatpush.msra.mxu0 %v1635
    %1699 = vmatpush.msra.mxu0 %v1633
    %1700 = vmatpush.msra.mxu0 %v1631
    %1701 = vmatpush.msra.mxu0 %v1629
    %1702 = vmatpush.msra.mxu0 %v1627
    %1703 = vmatpush.msra.mxu0 %v1625
    %1704 = vmatpush.msra.mxu0 %v1623
    %1705 = vmatpush.msra.mxu0 %v1621
    %1706 = vmatpush.msra.mxu0 %v1619
    %1707 = vmatmul.f32.gmra.mxu0 %v496
    %v1708 = vpop.f32.mrf.mxu0
    %v1709 = vadd.f32 %v1645, %v1708
    %1710 = vmatmul.f32.gmra.mxu0 %v655
    %v1711 = vpop.f32.mrf.mxu0
    %v1712 = vadd.f32 %v1645, %v1711
    %1713 = vmatmul.f32.gmra.mxu0 %v814
    %v1714 = vpop.f32.mrf.mxu0
    %v1715 = vadd.f32 %v1645, %v1714
    %1716 = vmatmul.f32.gmra.mxu0 %v973
    %v1717 = vpop.f32.mrf.mxu0
    %v1718 = vadd.f32 %v1645, %v1717
    %1719 = vmatmul.f32.gmra.mxu0 %v1132
    %v1720 = vpop.f32.mrf.mxu0
    %v1721 = vadd.f32 %v1645, %v1720
    %1722 = vmatmul.f32.gmra.mxu0 %v1291
    %v1723 = vpop.f32.mrf.mxu0
    %v1724 = vadd.f32 %v1645, %v1723
    %1725 = vmatmul.f32.gmra.mxu0 %v1450
    %v1726 = vpop.f32.mrf.mxu0
    %v1727 = vadd.f32 %v1645, %v1726
    %1728 = vmatmul.f32.gmra.mxu0 %v1648
    %v1729 = vpop.f32.mrf.mxu0
    %v1730 = vadd.f32 %v1645, %v1729
    %1731 = vdwg.mxu0
    %v1732 = vmax.f32 %v1668, 0.0
    %v1733 = vmax.f32 %v1709, 0.0
    %v1734 = vmax.f32 %v1671, 0.0
    %v1735 = vmax.f32 %v1712, 0.0
    %v1736 = vmax.f32 %v1674, 0.0
    %v1737 = vmax.f32 %v1715, 0.0
    %v1738 = vmax.f32 %v1677, 0.0
    %v1739 = vmax.f32 %v1718, 0.0
    %v1740 = vmax.f32 %v1680, 0.0
    %v1741 = vmax.f32 %v1721, 0.0
    %v1742 = vmax.f32 %v1683, 0.0
    %v1743 = vmax.f32 %v1724, 0.0
    %v1744 = vmax.f32 %v1686, 0.0
    %v1745 = vmax.f32 %v1727, 0.0
    %v1746 = vmax.f32 %v1689, 0.0
    %v1747 = vmax.f32 %v1730, 0.0
    %v1748 = vld [vmem:[#allocation9] sm:$0xff]
    %v1749 = vld [vmem:[#allocation9 + $0x8] sm:$0xff]
    %v1750 = vld [vmem:[#allocation9 + $0x10] sm:$0xff]
    %v1751 = vld [vmem:[#allocation9 + $0x18] sm:$0xff]
    %v1752 = vld [vmem:[#allocation9 + $0x20] sm:$0xff]
    %v1753 = vld [vmem:[#allocation9 + $0x28] sm:$0xff]
    %v1754 = vld [vmem:[#allocation9 + $0x30] sm:$0xff]
    %v1755 = vld [vmem:[#allocation9 + $0x38] sm:$0xff]
    %v1756 = vld [vmem:[#allocation9 + $0x40] sm:$0xff]
    %v1757 = vld [vmem:[#allocation9 + $0x48] sm:$0xff]
    %v1758 = vld [vmem:[#allocation9 + $0x50] sm:$0xff]
    %v1759 = vld [vmem:[#allocation9 + $0x58] sm:$0xff]
    %v1760 = vld [vmem:[#allocation9 + $0x60] sm:$0xff]
    %v1761 = vld [vmem:[#allocation9 + $0x68] sm:$0xff]
    %v1762 = vld [vmem:[#allocation9 + $0x70] sm:$0xff]
    %v1763 = vld [vmem:[#allocation9 + $0x78] sm:$0xff]
    %v1764 = vld [vmem:[#allocation9 + $0x80] sm:$0xff]
    %v1765 = vld [vmem:[#allocation9 + $0x88] sm:$0xff]
    %v1766 = vld [vmem:[#allocation9 + $0x90] sm:$0xff]
    %v1767 = vld [vmem:[#allocation9 + $0x98] sm:$0xff]
    %v1768 = vld [vmem:[#allocation9 + $0xa0] sm:$0xff]
    %v1769 = vld [vmem:[#allocation9 + $0xa8] sm:$0xff]
    %v1770 = vld [vmem:[#allocation9 + $0xb0] sm:$0xff]
    %v1771 = vld [vmem:[#allocation9 + $0xb8] sm:$0xff]
    %v1772 = vld [vmem:[#allocation9 + $0xc0] sm:$0xff]
    %v1773 = vld [vmem:[#allocation9 + $0xc8] sm:$0xff]
    %v1774 = vld [vmem:[#allocation9 + $0xd0] sm:$0xff]
    %v1775 = vld [vmem:[#allocation9 + $0xd8] sm:$0xff]
    %v1776 = vld [vmem:[#allocation9 + $0xe0] sm:$0xff]
    %v1777 = vld [vmem:[#allocation9 + $0xe8] sm:$0xff]
    %v1778 = vld [vmem:[#allocation9 + $0xf0] sm:$0xff]
    %v1779 = vld [vmem:[#allocation9 + $0xf8] sm:$0xff]
    %v1780 = vld [vmem:[#allocation9 + $0x100] sm:$0xff]
    %v1781 = vld [vmem:[#allocation9 + $0x108] sm:$0xff]
    %v1782 = vld [vmem:[#allocation9 + $0x110] sm:$0xff]
    %v1783 = vld [vmem:[#allocation9 + $0x118] sm:$0xff]
    %v1784 = vld [vmem:[#allocation9 + $0x120] sm:$0xff]
    %v1785 = vld [vmem:[#allocation9 + $0x128] sm:$0xff]
    %v1786 = vld [vmem:[#allocation9 + $0x130] sm:$0xff]
    %v1787 = vld [vmem:[#allocation9 + $0x138] sm:$0xff]
    %v1788 = vld [vmem:[#allocation9 + $0x140] sm:$0xff]
    %v1789 = vld [vmem:[#allocation9 + $0x148] sm:$0xff]
    %v1790 = vld [vmem:[#allocation9 + $0x150] sm:$0xff]
    %v1791 = vld [vmem:[#allocation9 + $0x158] sm:$0xff]
    %v1792 = vld [vmem:[#allocation9 + $0x160] sm:$0xff]
    %v1793 = vld [vmem:[#allocation9 + $0x168] sm:$0xff]
    %v1794 = vld [vmem:[#allocation9 + $0x170] sm:$0xff]
    %v1795 = vld [vmem:[#allocation9 + $0x178] sm:$0xff]
    %v1796 = vld [vmem:[%s9] sm:$0x3]
    %v1798 = vperm.slane %v1796, 0
    %v1799 = vperm.slane %v1796, 1
    %v1803 = vsel %vm494, %v1733, 0
    %v1806 = vsel %vm494, %v1735, 0
    %v1809 = vsel %vm494, %v1737, 0
    %v1812 = vsel %vm494, %v1739, 0
    %v1815 = vsel %vm494, %v1741, 0
    %v1818 = vsel %vm494, %v1743, 0
    %v1821 = vsel %vm494, %v1745, 0
    %v1824 = vsel %vm494, %v1747, 0
    %1826 = vmatpush.msra.mxu0 %v1778
    %1827 = vmatpush.msra.mxu0 %v1776
    %1828 = vmatpush.msra.mxu0 %v1774
    %1829 = vmatpush.msra.mxu0 %v1772
    %1830 = vmatpush.msra.mxu0 %v1770
    %1831 = vmatpush.msra.mxu0 %v1768
    %1832 = vmatpush.msra.mxu0 %v1766
    %1833 = vmatpush.msra.mxu0 %v1764
    %1834 = vmatpush.msra.mxu0 %v1762
    %1835 = vmatpush.msra.mxu0 %v1760
    %1836 = vmatpush.msra.mxu0 %v1758
    %1837 = vmatpush.msra.mxu0 %v1756
    %1838 = vmatpush.msra.mxu0 %v1754
    %1839 = vmatpush.msra.mxu0 %v1752
    %1840 = vmatpush.msra.mxu0 %v1750
    %1841 = vmatpush.msra.mxu0 %v1748
    %1842 = vmatmul.f32.gmra.mxu0 %v1732
    %v1843 = vpop.f32.mrf.mxu0
    %v1844 = vadd.f32 %v1798, %v1843
    %1845 = vmatmul.f32.gmra.mxu0 %v1734
    %v1846 = vpop.f32.mrf.mxu0
    %v1847 = vadd.f32 %v1798, %v1846
    %1848 = vmatmul.f32.gmra.mxu0 %v1736
    %v1849 = vpop.f32.mrf.mxu0
    %v1850 = vadd.f32 %v1798, %v1849
    %1851 = vmatmul.f32.gmra.mxu0 %v1738
    %v1852 = vpop.f32.mrf.mxu0
    %v1853 = vadd.f32 %v1798, %v1852
    %1854 = vmatmul.f32.gmra.mxu0 %v1740
    %v1855 = vpop.f32.mrf.mxu0
    %v1856 = vadd.f32 %v1798, %v1855
    %1857 = vmatmul.f32.gmra.mxu0 %v1742
    %v1858 = vpop.f32.mrf.mxu0
    %v1859 = vadd.f32 %v1798, %v1858
    %1860 = vmatmul.f32.gmra.mxu0 %v1744
    %v1861 = vpop.f32.mrf.mxu0
    %v1862 = vadd.f32 %v1798, %v1861
    %1863 = vmatmul.f32.gmra.mxu0 %v1746
    %v1864 = vpop.f32.mrf.mxu0
    %v1865 = vadd.f32 %v1798, %v1864
    %1866 = vdwg.mxu0
    %1867 = vmatpush.msra.mxu0 0.0
    %1868 = vmatpush.msra.mxu0 0.0
    %1869 = vmatpush.msra.mxu0 0.0
    %1870 = vmatpush.msra.mxu0 0.0
    %1871 = vmatpush.msra.mxu0 0.0
    %1872 = vmatpush.msra.mxu0 0.0
    %1873 = vmatpush.msra.mxu0 0.0
    %1874 = vmatpush.msra.mxu0 0.0
    %1875 = vmatpush.msra.mxu0 %v1794
    %1876 = vmatpush.msra.mxu0 %v1792
    %1877 = vmatpush.msra.mxu0 %v1790
    %1878 = vmatpush.msra.mxu0 %v1788
    %1879 = vmatpush.msra.mxu0 %v1786
    %1880 = vmatpush.msra.mxu0 %v1784
    %1881 = vmatpush.msra.mxu0 %v1782
    %1882 = vmatpush.msra.mxu0 %v1780
    %1883 = vmatmul.f32.gmra.mxu0 %v1803
    %v1884 = vpop.f32.mrf.mxu0
    %v1885 = vadd.f32 %v1844, %v1884
    %1886 = vmatmul.f32.gmra.mxu0 %v1806
    %v1887 = vpop.f32.mrf.mxu0
    %v1888 = vadd.f32 %v1847, %v1887
    %1889 = vmatmul.f32.gmra.mxu0 %v1809
    %v1890 = vpop.f32.mrf.mxu0
    %v1891 = vadd.f32 %v1850, %v1890
    %1892 = vmatmul.f32.gmra.mxu0 %v1812
    %v1893 = vpop.f32.mrf.mxu0
    %v1894 = vadd.f32 %v1853, %v1893
    %1895 = vmatmul.f32.gmra.mxu0 %v1815
    %v1896 = vpop.f32.mrf.mxu0
    %v1897 = vadd.f32 %v1856, %v1896
    %1898 = vmatmul.f32.gmra.mxu0 %v1818
    %v1899 = vpop.f32.mrf.mxu0
    %v1900 = vadd.f32 %v1859, %v1899
    %1901 = vmatmul.f32.gmra.mxu0 %v1821
    %v1902 = vpop.f32.mrf.mxu0
    %v1903 = vadd.f32 %v1862, %v1902
    %1904 = vmatmul.f32.gmra.mxu0 %v1824
    %v1905 = vpop.f32.mrf.mxu0
    %v1906 = vadd.f32 %v1865, %v1905
    %1907 = vdwg.mxu0
    %1908 = vmatpush.msra.mxu0 %v1779
    %1909 = vmatpush.msra.mxu0 %v1777
    %1910 = vmatpush.msra.mxu0 %v1775
    %1911 = vmatpush.msra.mxu0 %v1773
    %1912 = vmatpush.msra.mxu0 %v1771
    %1913 = vmatpush.msra.mxu0 %v1769
    %1914 = vmatpush.msra.mxu0 %v1767
    %1915 = vmatpush.msra.mxu0 %v1765
    %1916 = vmatpush.msra.mxu0 %v1763
    %1917 = vmatpush.msra.mxu0 %v1761
    %1918 = vmatpush.msra.mxu0 %v1759
    %1919 = vmatpush.msra.mxu0 %v1757
    %1920 = vmatpush.msra.mxu0 %v1755
    %1921 = vmatpush.msra.mxu0 %v1753
    %1922 = vmatpush.msra.mxu0 %v1751
    %1923 = vmatpush.msra.mxu0 %v1749
    %1924 = vmatmul.f32.gmra.mxu0 %v1732
    %v1925 = vpop.f32.mrf.mxu0
    %v1926 = vadd.f32 %v1799, %v1925
    %1927 = vmatmul.f32.gmra.mxu0 %v1734
    %v1928 = vpop.f32.mrf.mxu0
    %v1929 = vadd.f32 %v1799, %v1928
    %1930 = vmatmul.f32.gmra.mxu0 %v1736
    %v1931 = vpop.f32.mrf.mxu0
    %v1932 = vadd.f32 %v1799, %v1931
    %1933 = vmatmul.f32.gmra.mxu0 %v1738
    %v1934 = vpop.f32.mrf.mxu0
    %v1935 = vadd.f32 %v1799, %v1934
    %1936 = vmatmul.f32.gmra.mxu0 %v1740
    %v1937 = vpop.f32.mrf.mxu0
    %v1938 = vadd.f32 %v1799, %v1937
    %1939 = vmatmul.f32.gmra.mxu0 %v1742
    %v1940 = vpop.f32.mrf.mxu0
    %v1941 = vadd.f32 %v1799, %v1940
    %1942 = vmatmul.f32.gmra.mxu0 %v1744
    %v1943 = vpop.f32.mrf.mxu0
    %v1944 = vadd.f32 %v1799, %v1943
    %1945 = vmatmul.f32.gmra.mxu0 %v1746
    %v1946 = vpop.f32.mrf.mxu0
    %v1947 = vadd.f32 %v1799, %v1946
    %1948 = vdwg.mxu0
    %1949 = vmatpush.msra.mxu0 0.0
    %1950 = vmatpush.msra.mxu0 0.0
    %1951 = vmatpush.msra.mxu0 0.0
    %1952 = vmatpush.msra.mxu0 0.0
    %1953 = vmatpush.msra.mxu0 0.0
    %1954 = vmatpush.msra.mxu0 0.0
    %1955 = vmatpush.msra.mxu0 0.0
    %1956 = vmatpush.msra.mxu0 0.0
    %1957 = vmatpush.msra.mxu0 %v1795
    %1958 = vmatpush.msra.mxu0 %v1793
    %1959 = vmatpush.msra.mxu0 %v1791
    %1960 = vmatpush.msra.mxu0 %v1789
    %1961 = vmatpush.msra.mxu0 %v1787
    %1962 = vmatpush.msra.mxu0 %v1785
    %1963 = vmatpush.msra.mxu0 %v1783
    %1964 = vmatpush.msra.mxu0 %v1781
    %1965 = vmatmul.f32.gmra.mxu0 %v1803
    %v1966 = vpop.f32.mrf.mxu0
    %v1967 = vadd.f32 %v1926, %v1966
    %1968 = vmatmul.f32.gmra.mxu0 %v1806
    %v1969 = vpop.f32.mrf.mxu0
    %v1970 = vadd.f32 %v1929, %v1969
    %1971 = vmatmul.f32.gmra.mxu0 %v1809
    %v1972 = vpop.f32.mrf.mxu0
    %v1973 = vadd.f32 %v1932, %v1972
    %1974 = vmatmul.f32.gmra.mxu0 %v1812
    %v1975 = vpop.f32.mrf.mxu0
    %v1976 = vadd.f32 %v1935, %v1975
    %1977 = vmatmul.f32.gmra.mxu0 %v1815
    %v1978 = vpop.f32.mrf.mxu0
    %v1979 = vadd.f32 %v1938, %v1978
    %1980 = vmatmul.f32.gmra.mxu0 %v1818
    %v1981 = vpop.f32.mrf.mxu0
    %v1982 = vadd.f32 %v1941, %v1981
    %1983 = vmatmul.f32.gmra.mxu0 %v1821
    %v1984 = vpop.f32.mrf.mxu0
    %v1985 = vadd.f32 %v1944, %v1984
    %1986 = vmatmul.f32.gmra.mxu0 %v1824
    %v1987 = vpop.f32.mrf.mxu0
    %v1988 = vadd.f32 %v1947, %v1987
    %1989 = vdwg.mxu0
    %v1990 = vmax.f32 %v1885, 0.0
    %v1991 = vmax.f32 %v1967, 0.0
    %v1992 = vmax.f32 %v1888, 0.0
    %v1993 = vmax.f32 %v1970, 0.0
    %v1994 = vmax.f32 %v1891, 0.0
    %v1995 = vmax.f32 %v1973, 0.0
    %v1996 = vmax.f32 %v1894, 0.0
    %v1997 = vmax.f32 %v1976, 0.0
    %v1998 = vmax.f32 %v1897, 0.0
    %v1999 = vmax.f32 %v1979, 0.0
    %v2000 = vmax.f32 %v1900, 0.0
    %v2001 = vmax.f32 %v1982, 0.0
    %v2002 = vmax.f32 %v1903, 0.0
    %v2003 = vmax.f32 %v1985, 0.0
    %v2004 = vmax.f32 %v1906, 0.0
    %v2005 = vmax.f32 %v1988, 0.0
    %v2006 = vld [vmem:[%s10] sm:$0x3]
    %v2007 = vld [vmem:[#allocation3] sm:$0x1]
    %2009 = vset.pattern.permute.xlu0 0
    %2010 = vperm.xlu0 %2009, %v2007
    %v2011 = vpop.permute.xlu0 %2010
    %v2013 = vperm.slane %v2011, 0
    %v2015 = vperm.slane %v2006, 0
    %v2016 = vperm.slane %v2006, 1
    %v2018 = vsel %vm494, %v2016, 0
    %v2021 = vsel %vm494, %v1991, 0
    %v2024 = vsel %vm494, %v1993, 0
    %v2027 = vsel %vm494, %v1995, 0
    %v2030 = vsel %vm494, %v1997, 0
    %v2033 = vsel %vm494, %v1999, 0
    %v2036 = vsel %vm494, %v2001, 0
    %v2039 = vsel %vm494, %v2003, 0
    %v2042 = vsel %vm494, %v2005, 0
    %2044 = vmatpush.xpose.msra.mxu0 0.0
    %2045 = vmatpush.xpose.msra.mxu0 0.0
    %2046 = vmatpush.xpose.msra.mxu0 0.0
    %2047 = vmatpush.xpose.msra.mxu0 0.0
    %2048 = vmatpush.xpose.msra.mxu0 0.0
    %2049 = vmatpush.xpose.msra.mxu0 0.0
    %2050 = vmatpush.xpose.msra.mxu0 0.0
    %2051 = vmatpush.xpose.msra.mxu0 0.0
    %2052 = vmatpush.xpose.msra.mxu0 %v2004
    %2053 = vmatpush.xpose.msra.mxu0 %v2002
    %2054 = vmatpush.xpose.msra.mxu0 %v2000
    %2055 = vmatpush.xpose.msra.mxu0 %v1998
    %2056 = vmatpush.xpose.msra.mxu0 %v1996
    %2057 = vmatpush.xpose.msra.mxu0 %v1994
    %2058 = vmatpush.xpose.msra.mxu0 %v1992
    %2059 = vmatpush.xpose.msra.mxu0 %v1990
    %2060 = vmatmul.f32.gmra.mxu0 %v2015
    %v2061 = vpop.f32.mrf.mxu0
    %v2062 = vadd.f32 %v2013, %v2061
    %2063 = vdwg.mxu0
    %2064 = vmatpush.xpose.msra.mxu0 0.0
    %2065 = vmatpush.xpose.msra.mxu0 0.0
    %2066 = vmatpush.xpose.msra.mxu0 0.0
    %2067 = vmatpush.xpose.msra.mxu0 0.0
    %2068 = vmatpush.xpose.msra.mxu0 0.0
    %2069 = vmatpush.xpose.msra.mxu0 0.0
    %2070 = vmatpush.xpose.msra.mxu0 0.0
    %2071 = vmatpush.xpose.msra.mxu0 0.0
    %2072 = vmatpush.xpose.msra.mxu0 %v2042
    %2073 = vmatpush.xpose.msra.mxu0 %v2039
    %2074 = vmatpush.xpose.msra.mxu0 %v2036
    %2075 = vmatpush.xpose.msra.mxu0 %v2033
    %2076 = vmatpush.xpose.msra.mxu0 %v2030
    %2077 = vmatpush.xpose.msra.mxu0 %v2027
    %2078 = vmatpush.xpose.msra.mxu0 %v2024
    %2079 = vmatpush.xpose.msra.mxu0 %v2021
    %2080 = vmatmul.f32.gmra.mxu0 %v2018
    %v2081 = vpop.f32.mrf.mxu0
    %v2082 = vadd.f32 %v2062, %v2081
    %2083 = vdwg.mxu0
    %vm2084 = vcmask 516096
    %2085 = vst.msk [vmem:[#allocation10] sm:$0x1] %vm2084, %v2082
    // Predicated region
    $region62: #{tpu_custom_call.1} parent=1 // pred_check
      _
    $region63: #{tpu_custom_call.1} parent=1 // pred_check_branch
      %2087 = sbr.rel (0) target = $region65
    $region64: #{tpu_custom_call.1} parent=1 // pred_region
      %2089 = vsyncadd [#allocation6], 0
      %s2091 = sshll.u32 [#allocation10], 4
      %s2092 = int_to_ptr.vmem [resolvable:$true] %s2091
      %s2093 = sshll.u32 %s12, 4
      %s2094 = int_to_ptr.hbm [resolvable:$true] %s2093
      %2096 = dma.vmem_to_hbm [thread:$0]  %s2092, 16, %s2094, [#allocation6]
    $region65: #{tpu_custom_call.1} parent=1 // pred_fallthru
      _
    // Predicated region
    $region66: #{tpu_custom_call.1} parent=1 // pred_check
      _
    $region67: #{tpu_custom_call.1} parent=1 // pred_check_branch
      %2098 = sbr.rel (0) target = $region69
    $region68: #{tpu_custom_call.1} parent=1 // pred_region
      %2100 = vsyncadd [#allocation12], 0
      %s2102 = sshll.u32 [#allocation11], 4
      %s2103 = int_to_ptr.vmem [resolvable:$true] %s2102
      %s2104 = sshll.u32 %s13, 4
      %s2105 = int_to_ptr.hbm [resolvable:$true] %s2104
      %2107 = dma.vmem_to_hbm [thread:$0]  %s2103, 128, %s2105, [#allocation12]
    $region69: #{tpu_custom_call.1} parent=1 // pred_fallthru
      _
    // Predicated region
    $region70: #{tpu_custom_call.1} parent=1 // pred_check
      _
    $region71: #{tpu_custom_call.1} parent=1 // pred_check_branch
      %2109 = sbr.rel (0) target = $region73
    $region72: #{tpu_custom_call.1} parent=1 // pred_region
      %2111 = vsyncadd [#allocation12], 0
      %s2113 = sshll.u32 [#allocation13], 4
      %s2114 = int_to_ptr.vmem [resolvable:$true] %s2113
      %s2115 = sshll.u32 %s14, 4
      %s2116 = int_to_ptr.hbm [resolvable:$true] %s2115
      %2118 = dma.vmem_to_hbm [thread:$0]  %s2114, 128, %s2116, [#allocation12]
    $region73: #{tpu_custom_call.1} parent=1 // pred_fallthru
      _
    // Predicated region
    $region74: #{tpu_custom_call.1} parent=1 // pred_check
      _
    $region75: #{tpu_custom_call.1} parent=1 // pred_check_branch
      %2120 = sbr.rel (0) target = $region77
    $region76: #{tpu_custom_call.1} parent=1 // pred_region
      %2122 = dma.done [#allocation6], 16
    $region77: #{tpu_custom_call.1} parent=1 // pred_fallthru
      _
    // Predicated region
    $region78: #{tpu_custom_call.1} parent=1 // pred_check
      _
    $region79: #{tpu_custom_call.1} parent=1 // pred_check_branch
      %2124 = sbr.rel (0) target = $region81
    $region80: #{tpu_custom_call.1} parent=1 // pred_region
      %2126 = dma.done [#allocation12], 128
    $region81: #{tpu_custom_call.1} parent=1 // pred_fallthru
      _
    // Predicated region
    $region82: #{tpu_custom_call.1} parent=1 // pred_check
      _
    $region83: #{tpu_custom_call.1} parent=1 // pred_check_branch
      %2128 = sbr.rel (0) target = $region85
    $region84: #{tpu_custom_call.1} parent=1 // pred_region
      %2130 = dma.done [#allocation12], 128
    $region85: #{tpu_custom_call.1} parent=1 // pred_fallthru
      _
    %2131 = vsyncpa [#allocation5], 1
    %2132 = vsyncpa [#allocation8], 1
    %2133 = vsyncpa [#allocation6], 1
    %2134 = vsyncpa [#allocation12], 1

</llo_original>
